<compile_context>
chip_gen: v7x
topology: tpu7x:2x2x1
jax: 0.10.0
libtpu: 0.0.40
codegen_flags: <defaults>
</compile_context>

<pallas_src>
from functools import partial

import jax
import jax.numpy as jnp
from jax import lax
from jax.experimental import pallas as pl
from jax.experimental.pallas import tpu as pltpu


def psa_kernel(x_ref,
               wqca_w_ref, wqca_b_ref,
               wvca_w_ref, wvca_b_ref,
               last_w_ref, ln_w_ref, ln_b_ref,
               wqsa_w_ref, wqsa_b_ref,
               wvsa_w_ref, wvsa_b_ref,
               o_ref,
               m_ref, l_ref, sx_ref, xsum_ref,
               scale_ref, gvec_ref, gbias_ref,
               *, inv_hw):
    """Grid = (B, pass, HW-tile).  x block is (1, C, tHW) in NCHW layout."""
    p_idx = pl.program_id(1)
    t_idx = pl.program_id(2)

    # ---- init per-batch accumulators (start of pass 1) ----
    @pl.when(jnp.logical_and(p_idx == 0, t_idx == 0))
    def _init():
        m_ref[...] = jnp.full_like(m_ref, -jnp.inf)
        l_ref[...] = jnp.zeros_like(l_ref)
        sx_ref[...] = jnp.zeros_like(sx_ref)
        xsum_ref[...] = jnp.zeros_like(xsum_ref)

    # ---- pass 1: online softmax over HW for wq_ca + x reductions ----
    @pl.when(p_idx == 0)
    def _pass1():
        x = x_ref[0].astype(jnp.float32)                        # (C, tHW)
        # wq_ca logits for this tile: (1,C) @ (C,tHW) -> (1,tHW)
        wq = jnp.dot(wqca_w_ref[...], x,
                     preferred_element_type=jnp.float32) + wqca_b_ref[...]
        m_prev = m_ref[...]                                      # (1,1)
        m_new = jnp.maximum(m_prev, jnp.max(wq, axis=1, keepdims=True))
        alpha = jnp.exp(m_prev - m_new)                          # (1,1)
        pexp = jnp.exp(wq - m_new)                               # (1,tHW)
        l_ref[...] = alpha * l_ref[...] + jnp.sum(pexp, axis=1, keepdims=True)
        # accumulate x @ p (un-normalized):  (C,tHW) . (1,tHW) contracted on HW
        px = lax.dot_general(x, pexp, (((1,), (1,)), ((), ())),
                             preferred_element_type=jnp.float32)  # (C,1)
        sx_ref[...] = alpha * sx_ref[...] + px
        xsum_ref[...] = xsum_ref[...] + jnp.sum(x, axis=1, keepdims=True)
        m_ref[...] = m_new

    # ---- finalize per-batch scalars/vectors (first step of pass 2) ----
    @pl.when(jnp.logical_and(p_idx == 1, t_idx == 0))
    def _finalize():
        inv_l = pl.reciprocal(l_ref[...], approx=False)          # (1,1)
        ptx = sx_ref[...] * inv_l                                 # (C,1) == x @ softmax(wq_ca)

        # CA branch: mm -> last conv -> LayerNorm(C) -> sigmoid
        mm = jnp.dot(wvca_w_ref[...], ptx,
                     preferred_element_type=jnp.float32) + wvca_b_ref[...]   # (C2,1)
        y = jnp.dot(last_w_ref[...], mm,
                    preferred_element_type=jnp.float32)                      # (C,1)
        mu = jnp.mean(y, axis=0, keepdims=True)
        var = jnp.mean((y - mu) ** 2, axis=0, keepdims=True)
        yn = (y - mu) * lax.rsqrt(var + 1e-5)
        scale_ref[...] = jax.nn.sigmoid(yn * ln_w_ref[...] + ln_b_ref[...])  # (C,1)

        # SA branch: softmax over C2 of W_qsa @ mean(x) + b_qsa
        xmean = xsum_ref[...] * inv_hw                            # (C,1)
        qm = jnp.dot(wqsa_w_ref[...], xmean,
                     preferred_element_type=jnp.float32) + wqsa_b_ref[...]   # (C2,1)
        qm = qm - jnp.max(qm, axis=0, keepdims=True)
        qe = jnp.exp(qm)
        qs = qe * pl.reciprocal(jnp.sum(qe, axis=0, keepdims=True),
                                approx=False)                                 # (C2,1)
        # gvec^T = qs^T @ W_vsa  (contract C2, no explicit transpose)
        gvec_ref[...] = lax.dot_general(qs, wvsa_w_ref[...],
                                        (((0,), (0,)), ((), ())),
                                        preferred_element_type=jnp.float32)  # (1,C)
        gbias_ref[...] = jnp.sum(qs * wvsa_b_ref[...], axis=0, keepdims=True)  # (1,1)

    # ---- pass 2: apply per-tile ----
    @pl.when(p_idx == 1)
    def _pass2():
        x = x_ref[0].astype(jnp.float32)                          # (C, tHW)
        attn = jax.nn.sigmoid(
            jnp.dot(gvec_ref[...], x, preferred_element_type=jnp.float32)
            + gbias_ref[...])                                      # (1, tHW)
        o_ref[0] = (x * (scale_ref[...] + attn)).astype(o_ref.dtype)


def _pick_tile_hw(hw, max_tile=512):
    """Largest divisor of hw that is a multiple of 128 and <= max_tile,
    else the full hw (full-dim blocks are always layout-legal)."""
    best = None
    t = 128
    while t <= min(hw, max_tile):
        if hw % t == 0:
            best = t
        t += 128
    return best if best is not None else hw


def psa_pallas(x_nchw, params, *, max_tile_hw=512):
    B, C, H, W = x_nchw.shape
    HW = H * W
    C2 = params["wv_ca_w"].shape[0]
    tHW = _pick_tile_hw(HW, max_tile_hw)
    T = HW // tHW

    # NCHW -> (B, C, HW): pure reshape, no HBM transpose round trip.
    x_flat = x_nchw.reshape(B, C, HW)

    f32 = jnp.float32
    col = lambda a: jnp.asarray(a, f32).reshape(-1, 1)
    row = lambda a: jnp.asarray(a, f32).reshape(1, -1)
    wqca_w = row(params["wq_ca_w"])                   # (1, C)
    wqca_b = jnp.asarray(params["wq_ca_b"], f32).reshape(1, 1)
    wvca_w = jnp.asarray(params["wv_ca_w"], f32)      # (C2, C)
    wvca_b = col(params["wv_ca_b"])                   # (C2, 1)
    last_w = jnp.asarray(params["last_w"], f32)       # (C, C2)
    ln_w = col(params["ln_w"])                        # (C, 1)
    ln_b = col(params["ln_b"])                        # (C, 1)
    wqsa_w = jnp.asarray(params["wq_sa_w"], f32)      # (C2, C)
    wqsa_b = col(params["wq_sa_b"])                   # (C2, 1)
    wvsa_w = jnp.asarray(params["wv_sa_w"], f32)      # (C2, C)
    wvsa_b = col(params["wv_sa_b"])                   # (C2, 1)

    # VMEM budget: double-buffered x in/out blocks + f32 temps + weights,
    # capped at ~75% of physical VMEM for this generation.
    itemsize = jnp.dtype(x_nchw.dtype).itemsize
    xblk = C * tHW * itemsize
    wbytes = 4 * (3 * (C2 * C + C2) + C * C2 + 3 * C + 4)
    est = 4 * xblk + 4 * C * tHW * 4 + 2 * wbytes + (4 << 20)
    try:
        vmem_cap = int(pltpu.get_tpu_info().vmem_capacity_bytes)
    except Exception:
        vmem_cap = 64 << 20        # conservative (v7x) fallback
    vmem_limit = int(min(max(est, 32 << 20), (vmem_cap * 3) // 4))

    const = lambda shape: pl.BlockSpec(shape, lambda b, p, t: (0,) * len(shape))

    out_flat = pl.pallas_call(
        partial(psa_kernel, inv_hw=1.0 / HW),
        out_shape=jax.ShapeDtypeStruct((B, C, HW), x_nchw.dtype),
        grid=(B, 2, T),
        in_specs=[
            pl.BlockSpec((1, C, tHW), lambda b, p, t: (b, 0, t)),   # x tile
            const((1, C)), const((1, 1)),                           # wq_ca
            const((C2, C)), const((C2, 1)),                         # wv_ca
            const((C, C2)), const((C, 1)), const((C, 1)),           # last, LN
            const((C2, C)), const((C2, 1)),                         # wq_sa
            const((C2, C)), const((C2, 1)),                         # wv_sa
        ],
        # pass 1 pins the output index at tile 0 (never written there), pass 2
        # writes each tile exactly once -> no garbage writeback.
        out_specs=pl.BlockSpec((1, C, tHW), lambda b, p, t: (b, 0, p * t)),
        scratch_shapes=[
            pltpu.VMEM((1, 1), f32),   # running max of wq_ca logits
            pltpu.VMEM((1, 1), f32),   # running softmax denominator
            pltpu.VMEM((C, 1), f32),   # running (un-normalized) x @ p
            pltpu.VMEM((C, 1), f32),   # running sum(x) over HW
            pltpu.VMEM((C, 1), f32),   # scale_ca
            pltpu.VMEM((1, C), f32),   # gvec^T  (qs^T W_vsa)
            pltpu.VMEM((1, 1), f32),   # gbias   (qs^T b_vsa)
        ],
        compiler_params=pltpu.CompilerParams(
            dimension_semantics=("parallel", "arbitrary", "arbitrary"),
            vmem_limit_bytes=vmem_limit),
    )(x_flat, wqca_w, wqca_b, wvca_w, wvca_b, last_w, ln_w, ln_b,
      wqsa_w, wqsa_b, wvsa_w, wvsa_b)

    return out_flat.reshape(B, C, H, W)


def psa_reference(x_nchw, params):
    """Pure-JAX reference of the PyTorch PSA forward (NCHW)."""
    B, C, H, W = x_nchw.shape
    HW = H * W
    x_flat = jnp.transpose(x_nchw, (0, 2, 3, 1)).reshape(B, HW, C)  # (B,HW,C)

    # CA
    wv = jnp.einsum("bpc,oc->bpo", x_flat, params["wv_ca_w"]) + params["wv_ca_b"]
    wq = jnp.einsum("bpc,oc->bpo", x_flat, params["wq_ca_w"]) + params["wq_ca_b"]
    p = jax.nn.softmax(wq, axis=1)                                  # (B,HW,1)
    mm = jnp.sum(wv * p, axis=1)                                    # (B,C2)
    y = jnp.einsum("bo,co->bc", mm, params["last_w"])               # (B,C)
    mu = jnp.mean(y, axis=1, keepdims=True)
    var = jnp.mean((y - mu) ** 2, axis=1, keepdims=True)
    yn = (y - mu) / jnp.sqrt(var + 1e-5)
    scale = jax.nn.sigmoid(yn * params["ln_w"] + params["ln_b"])    # (B,C)
    ca_out = x_flat * scale[:, None, :]

    # SA
    q = jnp.einsum("bpc,oc->bpo", x_flat, params["wq_sa_w"]) + params["wq_sa_b"]
    v = jnp.einsum("bpc,oc->bpo", x_flat, params["wv_sa_w"]) + params["wv_sa_b"]
    qs = jax.nn.softmax(jnp.mean(q, axis=1), axis=1)                # (B,C2)
    attn = jax.nn.sigmoid(jnp.einsum("bpo,bo->bp", v, qs))          # (B,HW)
    sa_out = x_flat * attn[:, :, None]

    out = ca_out + sa_out
    return jnp.transpose(out.reshape(B, H, W, C), (0, 3, 1, 2))


def make_params(key, C):
    C2 = C // 2
    ks = jax.random.split(key, 8)
    s = 0.2
    return {
        "wv_ca_w": s * jax.random.normal(ks[0], (C2, C), jnp.float32),
        "wv_ca_b": s * jax.random.normal(ks[1], (1, C2), jnp.float32),
        "wq_ca_w": s * jax.random.normal(ks[2], (1, C), jnp.float32),
        "wq_ca_b": s * jax.random.normal(ks[3], (1, 1), jnp.float32),
        "last_w":  s * jax.random.normal(ks[4], (C, C2), jnp.float32),
        "ln_w":    jnp.ones((1, C), jnp.float32),
        "ln_b":    jnp.zeros((1, C), jnp.float32),
        "wq_sa_w": s * jax.random.normal(ks[5], (C2, C), jnp.float32),
        "wq_sa_b": s * jax.random.normal(ks[6], (1, C2), jnp.float32),
        "wv_sa_w": s * jax.random.normal(ks[7], (C2, C), jnp.float32),
        "wv_sa_b": jnp.zeros((1, C2), jnp.float32),
    }


if __name__ == "__main__":
    key = jax.random.PRNGKey(0)
    k1, k2, k3, k4 = jax.random.split(key, 4)

    # Case 1: the spec's small shape (single HW tile).
    B, C, H, W = 2, 4, 16, 16
    x = jax.random.normal(k1, (B, C, H, W), jnp.float32)
    params = make_params(k2, C)
    out = psa_pallas(x, params)
    jax.block_until_ready(out)
    ref = psa_reference(x, params)
    assert out.shape == (B, C, H, W)
    assert jnp.allclose(out, ref, atol=1e-4, rtol=1e-4), \
        float(jnp.max(jnp.abs(out - ref)))

    # Case 2: larger spatial map -> exercises the multi-tile online-softmax
    # two-pass path (HW=1024, tile=512 -> 2 tiles per pass).
    B2, Cc, H2, W2 = 1, 8, 32, 32
    x2 = jax.random.normal(k3, (B2, Cc, H2, W2), jnp.float32)
    params2 = make_params(k4, Cc)
    out2 = psa_pallas(x2, params2)
    jax.block_until_ready(out2)
    ref2 = psa_reference(x2, params2)
    assert jnp.allclose(out2, ref2, atol=1e-4, rtol=1e-4), \
        float(jnp.max(jnp.abs(out2 - ref2)))

    print("KERNEL_OK")
</pallas_src>

<mosaic_0001>
module attributes {stable_mosaic.version = 11 : i64} {
  func.func @psa_kernel(%arg0: i32, %arg1: i32, %arg2: i32, %arg3: memref<1x4x256xf32, #tpu.memory_space<vmem>>, %arg4: memref<1x4xf32, #tpu.memory_space<vmem>>, %arg5: memref<1x1xf32, #tpu.memory_space<vmem>>, %arg6: memref<2x4xf32, #tpu.memory_space<vmem>>, %arg7: memref<2x1xf32, #tpu.memory_space<vmem>>, %arg8: memref<4x2xf32, #tpu.memory_space<vmem>>, %arg9: memref<4x1xf32, #tpu.memory_space<vmem>>, %arg10: memref<4x1xf32, #tpu.memory_space<vmem>>, %arg11: memref<2x4xf32, #tpu.memory_space<vmem>>, %arg12: memref<2x1xf32, #tpu.memory_space<vmem>>, %arg13: memref<2x4xf32, #tpu.memory_space<vmem>>, %arg14: memref<2x1xf32, #tpu.memory_space<vmem>>, %arg15: memref<1x4x256xf32, #tpu.memory_space<vmem>>, %arg16: memref<1x1xf32, #tpu.memory_space<vmem>>, %arg17: memref<1x1xf32, #tpu.memory_space<vmem>>, %arg18: memref<4x1xf32, #tpu.memory_space<vmem>>, %arg19: memref<4x1xf32, #tpu.memory_space<vmem>>, %arg20: memref<4x1xf32, #tpu.memory_space<vmem>>, %arg21: memref<1x4xf32, #tpu.memory_space<vmem>>, %arg22: memref<1x1xf32, #tpu.memory_space<vmem>>) attributes {dimension_semantics = [#tpu.dimension_semantics<parallel>, #tpu.dimension_semantics<arbitrary>, #tpu.dimension_semantics<arbitrary>], iteration_bounds = array<i64: 2, 2, 1>, scalar_prefetch = 0 : i64, scratch_operands = 7 : i64, tpu.core_type = #tpu.core_type<tc>, window_params = [{transform_indices = @transform_0, window_bounds = array<i64: 1, 4, 256>}, {pipeline_mode = #tpu.pipeline_mode<synchronous>, transform_indices = @transform_1, window_bounds = array<i64: 1, 4>}, {pipeline_mode = #tpu.pipeline_mode<synchronous>, transform_indices = @transform_2, window_bounds = array<i64: 1, 1>}, {pipeline_mode = #tpu.pipeline_mode<synchronous>, transform_indices = @transform_3, window_bounds = array<i64: 2, 4>}, {pipeline_mode = #tpu.pipeline_mode<synchronous>, transform_indices = @transform_4, window_bounds = array<i64: 2, 1>}, {pipeline_mode = #tpu.pipeline_mode<synchronous>, transform_indices = @transform_5, window_bounds = array<i64: 4, 2>}, {pipeline_mode = #tpu.pipeline_mode<synchronous>, transform_indices = @transform_6, window_bounds = array<i64: 4, 1>}, {pipeline_mode = #tpu.pipeline_mode<synchronous>, transform_indices = @transform_7, window_bounds = array<i64: 4, 1>}, {pipeline_mode = #tpu.pipeline_mode<synchronous>, transform_indices = @transform_8, window_bounds = array<i64: 2, 4>}, {pipeline_mode = #tpu.pipeline_mode<synchronous>, transform_indices = @transform_9, window_bounds = array<i64: 2, 1>}, {pipeline_mode = #tpu.pipeline_mode<synchronous>, transform_indices = @transform_10, window_bounds = array<i64: 2, 4>}, {pipeline_mode = #tpu.pipeline_mode<synchronous>, transform_indices = @transform_11, window_bounds = array<i64: 2, 1>}, {transform_indices = @transform_12, window_bounds = array<i64: 1, 4, 256>}]} {
    %c0_i32 = arith.constant 0 : i32
    %0 = arith.cmpi eq, %arg1, %c0_i32 : i32
    %c0_i32_0 = arith.constant 0 : i32
    %1 = arith.cmpi eq, %arg2, %c0_i32_0 : i32
    %2 = arith.andi %0, %1 : i1
    %3 = arith.extui %2 : i1 to i32
    %c0_i32_1 = arith.constant 0 : i32
    %4 = arith.cmpi ne, %3, %c0_i32_1 : i32
    scf.if %4 {
      %cst = arith.constant 0xFF800000 : f32
      %16 = vector.broadcast %cst : f32 to vector<1x1xf32>
      %c0 = arith.constant 0 : index
      %c0_8 = arith.constant 0 : index
      %17 = vector.load %arg16[%c0, %c0_8] : memref<1x1xf32, #tpu.memory_space<vmem>>, vector<1x1xf32>
      tpu.vector_store %arg16[%c0, %c0_8], %16 {strides = array<i32>} : memref<1x1xf32, #tpu.memory_space<vmem>>, vector<1x1xf32>,
      %cst_9 = arith.constant 0.000000e+00 : f32
      %18 = vector.broadcast %cst_9 : f32 to vector<1x1xf32>
      %c0_10 = arith.constant 0 : index
      %c0_11 = arith.constant 0 : index
      %19 = vector.load %arg17[%c0_10, %c0_11] : memref<1x1xf32, #tpu.memory_space<vmem>>, vector<1x1xf32>
      tpu.vector_store %arg17[%c0_10, %c0_11], %18 {strides = array<i32>} : memref<1x1xf32, #tpu.memory_space<vmem>>, vector<1x1xf32>,
      %cst_12 = arith.constant 0.000000e+00 : f32
      %20 = vector.broadcast %cst_12 : f32 to vector<4x1xf32>
      %c0_13 = arith.constant 0 : index
      %c0_14 = arith.constant 0 : index
      %21 = vector.load %arg18[%c0_13, %c0_14] : memref<4x1xf32, #tpu.memory_space<vmem>>, vector<4x1xf32>
      tpu.vector_store %arg18[%c0_13, %c0_14], %20 {strides = array<i32>} : memref<4x1xf32, #tpu.memory_space<vmem>>, vector<4x1xf32>,
      %cst_15 = arith.constant 0.000000e+00 : f32
      %22 = vector.broadcast %cst_15 : f32 to vector<4x1xf32>
      %c0_16 = arith.constant 0 : index
      %c0_17 = arith.constant 0 : index
      %23 = vector.load %arg19[%c0_16, %c0_17] : memref<4x1xf32, #tpu.memory_space<vmem>>, vector<4x1xf32>
      tpu.vector_store %arg19[%c0_16, %c0_17], %22 {strides = array<i32>} : memref<4x1xf32, #tpu.memory_space<vmem>>, vector<4x1xf32>,
    } else {
    }
    %c0_i32_2 = arith.constant 0 : i32
    %5 = arith.cmpi eq, %arg1, %c0_i32_2 : i32
    %6 = arith.extui %5 : i1 to i32
    %c0_i32_3 = arith.constant 0 : i32
    %7 = arith.cmpi ne, %6, %c0_i32_3 : i32
    scf.if %7 {
      %c0 = arith.constant 0 : index
      %c0_8 = arith.constant 0 : index
      %c0_9 = arith.constant 0 : index
      %16 = vector.load %arg3[%c0, %c0_8, %c0_9] : memref<1x4x256xf32, #tpu.memory_space<vmem>>, vector<1x4x256xf32>
      %17 = vector.shape_cast %16 : vector<1x4x256xf32> to vector<4x256xf32>
      %c0_10 = arith.constant 0 : index
      %c0_11 = arith.constant 0 : index
      %18 = vector.load %arg4[%c0_10, %c0_11] : memref<1x4xf32, #tpu.memory_space<vmem>>, vector<1x4xf32>
      %cst = arith.constant dense<0.000000e+00> : vector<1x256xf32>
      %19 = tpu.matmul %18, %17, %cst {dimension_numbers = #tpu.dot_dimension_numbers<[1], [0], [0], [1], [0, 0, 1, 1], [], []>} : vector<1x4xf32>, vector<4x256xf32>, vector<1x256xf32> -> vector<1x256xf32>
      %c0_12 = arith.constant 0 : index
      %c0_13 = arith.constant 0 : index
      %20 = vector.load %arg5[%c0_12, %c0_13] : memref<1x1xf32, #tpu.memory_space<vmem>>, vector<1x1xf32>
      %21 = vector.broadcast %20 : vector<1x1xf32> to vector<1x256xf32>
      %22 = arith.addf %19, %21 : vector<1x256xf32>
      %c0_14 = arith.constant 0 : index
      %c0_15 = arith.constant 0 : index
      %23 = vector.load %arg16[%c0_14, %c0_15] : memref<1x1xf32, #tpu.memory_space<vmem>>, vector<1x1xf32>
      %cst_16 = arith.constant dense<0xFF800000> : vector<1xf32>
      %24 = vector.multi_reduction <maximumf>, %22, %cst_16 [1] : vector<1x256xf32> to vector<1xf32>
      %25 = vector.shape_cast %24 : vector<1xf32> to vector<1x1xf32>
      %26 = arith.maximumf %23, %25 : vector<1x1xf32>
      %27 = arith.subf %23, %26 : vector<1x1xf32>
      %28 = math.exp %27 : vector<1x1xf32>
      %29 = vector.broadcast %26 : vector<1x1xf32> to vector<1x256xf32>
      %30 = arith.subf %22, %29 : vector<1x256xf32>
      %31 = math.exp %30 : vector<1x256xf32>
      %c0_17 = arith.constant 0 : index
      %c0_18 = arith.constant 0 : index
      %32 = vector.load %arg17[%c0_17, %c0_18] : memref<1x1xf32, #tpu.memory_space<vmem>>, vector<1x1xf32>
      %33 = arith.mulf %28, %32 : vector<1x1xf32>
      %cst_19 = arith.constant dense<0.000000e+00> : vector<1xf32>
      %34 = vector.multi_reduction <add>, %31, %cst_19 [1] : vector<1x256xf32> to vector<1xf32>
      %35 = vector.shape_cast %34 : vector<1xf32> to vector<1x1xf32>
      %36 = arith.addf %33, %35 : vector<1x1xf32>
      %c0_20 = arith.constant 0 : index
      %c0_21 = arith.constant 0 : index
      %37 = vector.load %arg17[%c0_20, %c0_21] : memref<1x1xf32, #tpu.memory_space<vmem>>, vector<1x1xf32>
      tpu.vector_store %arg17[%c0_20, %c0_21], %36 {strides = array<i32>} : memref<1x1xf32, #tpu.memory_space<vmem>>, vector<1x1xf32>,
      %cst_22 = arith.constant dense<0.000000e+00> : vector<4x1xf32>
      %38 = tpu.matmul %17, %31, %cst_22 {dimension_numbers = #tpu.dot_dimension_numbers<[1], [1], [0], [0], [0, 0, 1, 0], [], []>} : vector<4x256xf32>, vector<1x256xf32>, vector<4x1xf32> -> vector<4x1xf32>
      %c0_23 = arith.constant 0 : index
      %c0_24 = arith.constant 0 : index
      %39 = vector.load %arg18[%c0_23, %c0_24] : memref<4x1xf32, #tpu.memory_space<vmem>>, vector<4x1xf32>
      %40 = vector.broadcast %28 : vector<1x1xf32> to vector<4x1xf32>
      %41 = arith.mulf %40, %39 : vector<4x1xf32>
      %42 = arith.addf %41, %38 : vector<4x1xf32>
      %c0_25 = arith.constant 0 : index
      %c0_26 = arith.constant 0 : index
      %43 = vector.load %arg18[%c0_25, %c0_26] : memref<4x1xf32, #tpu.memory_space<vmem>>, vector<4x1xf32>
      tpu.vector_store %arg18[%c0_25, %c0_26], %42 {strides = array<i32>} : memref<4x1xf32, #tpu.memory_space<vmem>>, vector<4x1xf32>,
      %c0_27 = arith.constant 0 : index
      %c0_28 = arith.constant 0 : index
      %44 = vector.load %arg19[%c0_27, %c0_28] : memref<4x1xf32, #tpu.memory_space<vmem>>, vector<4x1xf32>
      %cst_29 = arith.constant dense<0.000000e+00> : vector<4xf32>
      %45 = vector.multi_reduction <add>, %17, %cst_29 [1] : vector<4x256xf32> to vector<4xf32>
      %46 = vector.shape_cast %45 : vector<4xf32> to vector<4x1xf32>
      %47 = arith.addf %44, %46 : vector<4x1xf32>
      %c0_30 = arith.constant 0 : index
      %c0_31 = arith.constant 0 : index
      %48 = vector.load %arg19[%c0_30, %c0_31] : memref<4x1xf32, #tpu.memory_space<vmem>>, vector<4x1xf32>
      tpu.vector_store %arg19[%c0_30, %c0_31], %47 {strides = array<i32>} : memref<4x1xf32, #tpu.memory_space<vmem>>, vector<4x1xf32>,
      %c0_32 = arith.constant 0 : index
      %c0_33 = arith.constant 0 : index
      %49 = vector.load %arg16[%c0_32, %c0_33] : memref<1x1xf32, #tpu.memory_space<vmem>>, vector<1x1xf32>
      tpu.vector_store %arg16[%c0_32, %c0_33], %26 {strides = array<i32>} : memref<1x1xf32, #tpu.memory_space<vmem>>, vector<1x1xf32>,
    } else {
    }
    %c1_i32 = arith.constant 1 : i32
    %8 = arith.cmpi eq, %arg1, %c1_i32 : i32
    %c0_i32_4 = arith.constant 0 : i32
    %9 = arith.cmpi eq, %arg2, %c0_i32_4 : i32
    %10 = arith.andi %8, %9 : i1
    %11 = arith.extui %10 : i1 to i32
    %c0_i32_5 = arith.constant 0 : i32
    %12 = arith.cmpi ne, %11, %c0_i32_5 : i32
    scf.if %12 {
      %c0 = arith.constant 0 : index
      %c0_8 = arith.constant 0 : index
      %16 = vector.load %arg17[%c0, %c0_8] : memref<1x1xf32, #tpu.memory_space<vmem>>, vector<1x1xf32>
      %17 = tpu.reciprocal %16 : vector<1x1xf32> -> vector<1x1xf32>
      %c0_9 = arith.constant 0 : index
      %c0_10 = arith.constant 0 : index
      %18 = vector.load %arg18[%c0_9, %c0_10] : memref<4x1xf32, #tpu.memory_space<vmem>>, vector<4x1xf32>
      %19 = vector.broadcast %17 : vector<1x1xf32> to vector<4x1xf32>
      %20 = arith.mulf %18, %19 : vector<4x1xf32>
      %c0_11 = arith.constant 0 : index
      %c0_12 = arith.constant 0 : index
      %21 = vector.load %arg6[%c0_11, %c0_12] : memref<2x4xf32, #tpu.memory_space<vmem>>, vector<2x4xf32>
      %cst = arith.constant dense<0.000000e+00> : vector<2x1xf32>
      %22 = tpu.matmul %21, %20, %cst {dimension_numbers = #tpu.dot_dimension_numbers<[1], [0], [0], [1], [0, 0, 1, 1], [], []>} : vector<2x4xf32>, vector<4x1xf32>, vector<2x1xf32> -> vector<2x1xf32>
      %c0_13 = arith.constant 0 : index
      %c0_14 = arith.constant 0 : index
      %23 = vector.load %arg7[%c0_13, %c0_14] : memref<2x1xf32, #tpu.memory_space<vmem>>, vector<2x1xf32>
      %24 = arith.addf %22, %23 : vector<2x1xf32>
      %c0_15 = arith.constant 0 : index
      %c0_16 = arith.constant 0 : index
      %25 = vector.load %arg8[%c0_15, %c0_16] : memref<4x2xf32, #tpu.memory_space<vmem>>, vector<4x2xf32>
      %cst_17 = arith.constant dense<0.000000e+00> : vector<4x1xf32>
      %26 = tpu.matmul %25, %24, %cst_17 {dimension_numbers = #tpu.dot_dimension_numbers<[1], [0], [0], [1], [0, 0, 1, 1], [], []>} : vector<4x2xf32>, vector<2x1xf32>, vector<4x1xf32> -> vector<4x1xf32>
      %cst_18 = arith.constant dense<0.000000e+00> : vector<1xf32>
      %27 = vector.multi_reduction <add>, %26, %cst_18 [0] : vector<4x1xf32> to vector<1xf32>
      %28 = vector.shape_cast %27 : vector<1xf32> to vector<1x1xf32>
      %cst_19 = arith.constant 4.000000e+00 : f32
      %29 = vector.broadcast %cst_19 : f32 to vector<1x1xf32>
      %30 = arith.divf %28, %29 : vector<1x1xf32>
      %31 = vector.broadcast %30 : vector<1x1xf32> to vector<4x1xf32>
      %32 = arith.subf %26, %31 : vector<4x1xf32>
      %33 = arith.mulf %32, %32 : vector<4x1xf32>
      %cst_20 = arith.constant dense<0.000000e+00> : vector<1xf32>
      %34 = vector.multi_reduction <add>, %33, %cst_20 [0] : vector<4x1xf32> to vector<1xf32>
      %35 = vector.shape_cast %34 : vector<1xf32> to vector<1x1xf32>
      %cst_21 = arith.constant 4.000000e+00 : f32
      %36 = vector.broadcast %cst_21 : f32 to vector<1x1xf32>
      %37 = arith.divf %35, %36 : vector<1x1xf32>
      %38 = vector.broadcast %30 : vector<1x1xf32> to vector<4x1xf32>
      %39 = arith.subf %26, %38 : vector<4x1xf32>
      %cst_22 = arith.constant 9.99999974E-6 : f32
      %40 = vector.broadcast %cst_22 : f32 to vector<1x1xf32>
      %41 = arith.addf %37, %40 : vector<1x1xf32>
      %42 = math.rsqrt %41 : vector<1x1xf32>
      %43 = vector.broadcast %42 : vector<1x1xf32> to vector<4x1xf32>
      %44 = arith.mulf %39, %43 : vector<4x1xf32>
      %c0_23 = arith.constant 0 : index
      %c0_24 = arith.constant 0 : index
      %45 = vector.load %arg9[%c0_23, %c0_24] : memref<4x1xf32, #tpu.memory_space<vmem>>, vector<4x1xf32>
      %46 = arith.mulf %44, %45 : vector<4x1xf32>
      %c0_25 = arith.constant 0 : index
      %c0_26 = arith.constant 0 : index
      %47 = vector.load %arg10[%c0_25, %c0_26] : memref<4x1xf32, #tpu.memory_space<vmem>>, vector<4x1xf32>
      %48 = arith.addf %46, %47 : vector<4x1xf32>
      %49 = arith.negf %48 : vector<4x1xf32>
      %50 = math.exp %49 : vector<4x1xf32>
      %cst_27 = arith.constant 1.000000e+00 : f32
      %51 = vector.broadcast %cst_27 : f32 to vector<4x1xf32>
      %52 = arith.addf %51, %50 : vector<4x1xf32>
      %53 = arith.divf %51, %52 : vector<4x1xf32>
      %c0_28 = arith.constant 0 : index
      %c0_29 = arith.constant 0 : index
      %54 = vector.load %arg20[%c0_28, %c0_29] : memref<4x1xf32, #tpu.memory_space<vmem>>, vector<4x1xf32>
      tpu.vector_store %arg20[%c0_28, %c0_29], %53 {strides = array<i32>} : memref<4x1xf32, #tpu.memory_space<vmem>>, vector<4x1xf32>,
      %c0_30 = arith.constant 0 : index
      %c0_31 = arith.constant 0 : index
      %55 = vector.load %arg19[%c0_30, %c0_31] : memref<4x1xf32, #tpu.memory_space<vmem>>, vector<4x1xf32>
      %cst_32 = arith.constant 3.906250e-03 : f32
      %56 = vector.broadcast %cst_32 : f32 to vector<4x1xf32>
      %57 = arith.mulf %55, %56 : vector<4x1xf32>
      %c0_33 = arith.constant 0 : index
      %c0_34 = arith.constant 0 : index
      %58 = vector.load %arg11[%c0_33, %c0_34] : memref<2x4xf32, #tpu.memory_space<vmem>>, vector<2x4xf32>
      %cst_35 = arith.constant dense<0.000000e+00> : vector<2x1xf32>
      %59 = tpu.matmul %58, %57, %cst_35 {dimension_numbers = #tpu.dot_dimension_numbers<[1], [0], [0], [1], [0, 0, 1, 1], [], []>} : vector<2x4xf32>, vector<4x1xf32>, vector<2x1xf32> -> vector<2x1xf32>
      %c0_36 = arith.constant 0 : index
      %c0_37 = arith.constant 0 : index
      %60 = vector.load %arg12[%c0_36, %c0_37] : memref<2x1xf32, #tpu.memory_space<vmem>>, vector<2x1xf32>
      %61 = arith.addf %59, %60 : vector<2x1xf32>
      %cst_38 = arith.constant dense<0xFF800000> : vector<1xf32>
      %62 = vector.multi_reduction <maximumf>, %61, %cst_38 [0] : vector<2x1xf32> to vector<1xf32>
      %63 = vector.shape_cast %62 : vector<1xf32> to vector<1x1xf32>
      %64 = vector.broadcast %63 : vector<1x1xf32> to vector<2x1xf32>
      %65 = arith.subf %61, %64 : vector<2x1xf32>
      %66 = math.exp %65 : vector<2x1xf32>
      %cst_39 = arith.constant dense<0.000000e+00> : vector<1xf32>
      %67 = vector.multi_reduction <add>, %66, %cst_39 [0] : vector<2x1xf32> to vector<1xf32>
      %68 = vector.shape_cast %67 : vector<1xf32> to vector<1x1xf32>
      %69 = tpu.reciprocal %68 : vector<1x1xf32> -> vector<1x1xf32>
      %70 = vector.broadcast %69 : vector<1x1xf32> to vector<2x1xf32>
      %71 = arith.mulf %66, %70 : vector<2x1xf32>
      %c0_40 = arith.constant 0 : index
      %c0_41 = arith.constant 0 : index
      %72 = vector.load %arg13[%c0_40, %c0_41] : memref<2x4xf32, #tpu.memory_space<vmem>>, vector<2x4xf32>
      %cst_42 = arith.constant dense<0.000000e+00> : vector<1x4xf32>
      %73 = tpu.matmul %71, %72, %cst_42 {dimension_numbers = #tpu.dot_dimension_numbers<[0], [0], [1], [1], [0, 1, 1, 1], [], []>} : vector<2x1xf32>, vector<2x4xf32>, vector<1x4xf32> -> vector<1x4xf32>
      %c0_43 = arith.constant 0 : index
      %c0_44 = arith.constant 0 : index
      %74 = vector.load %arg21[%c0_43, %c0_44] : memref<1x4xf32, #tpu.memory_space<vmem>>, vector<1x4xf32>
      tpu.vector_store %arg21[%c0_43, %c0_44], %73 {strides = array<i32>} : memref<1x4xf32, #tpu.memory_space<vmem>>, vector<1x4xf32>,
      %c0_45 = arith.constant 0 : index
      %c0_46 = arith.constant 0 : index
      %75 = vector.load %arg14[%c0_45, %c0_46] : memref<2x1xf32, #tpu.memory_space<vmem>>, vector<2x1xf32>
      %76 = arith.mulf %71, %75 : vector<2x1xf32>
      %cst_47 = arith.constant dense<0.000000e+00> : vector<1xf32>
      %77 = vector.multi_reduction <add>, %76, %cst_47 [0] : vector<2x1xf32> to vector<1xf32>
      %78 = vector.shape_cast %77 : vector<1xf32> to vector<1x1xf32>
      %c0_48 = arith.constant 0 : index
      %c0_49 = arith.constant 0 : index
      %79 = vector.load %arg22[%c0_48, %c0_49] : memref<1x1xf32, #tpu.memory_space<vmem>>, vector<1x1xf32>
      tpu.vector_store %arg22[%c0_48, %c0_49], %78 {strides = array<i32>} : memref<1x1xf32, #tpu.memory_space<vmem>>, vector<1x1xf32>,
    } else {
    }
    %c1_i32_6 = arith.constant 1 : i32
    %13 = arith.cmpi eq, %arg1, %c1_i32_6 : i32
    %14 = arith.extui %13 : i1 to i32
    %c0_i32_7 = arith.constant 0 : i32
    %15 = arith.cmpi ne, %14, %c0_i32_7 : i32
    scf.if %15 {
      %c0 = arith.constant 0 : index
      %c0_8 = arith.constant 0 : index
      %c0_9 = arith.constant 0 : index
      %16 = vector.load %arg3[%c0, %c0_8, %c0_9] : memref<1x4x256xf32, #tpu.memory_space<vmem>>, vector<1x4x256xf32>
      %17 = vector.shape_cast %16 : vector<1x4x256xf32> to vector<4x256xf32>
      %c0_10 = arith.constant 0 : index
      %c0_11 = arith.constant 0 : index
      %18 = vector.load %arg21[%c0_10, %c0_11] : memref<1x4xf32, #tpu.memory_space<vmem>>, vector<1x4xf32>
      %cst = arith.constant dense<0.000000e+00> : vector<1x256xf32>
      %19 = tpu.matmul %18, %17, %cst {dimension_numbers = #tpu.dot_dimension_numbers<[1], [0], [0], [1], [0, 0, 1, 1], [], []>} : vector<1x4xf32>, vector<4x256xf32>, vector<1x256xf32> -> vector<1x256xf32>
      %c0_12 = arith.constant 0 : index
      %c0_13 = arith.constant 0 : index
      %20 = vector.load %arg22[%c0_12, %c0_13] : memref<1x1xf32, #tpu.memory_space<vmem>>, vector<1x1xf32>
      %21 = vector.broadcast %20 : vector<1x1xf32> to vector<1x256xf32>
      %22 = arith.addf %19, %21 : vector<1x256xf32>
      %23 = arith.negf %22 : vector<1x256xf32>
      %24 = math.exp %23 : vector<1x256xf32>
      %cst_14 = arith.constant 1.000000e+00 : f32
      %25 = vector.broadcast %cst_14 : f32 to vector<1x256xf32>
      %26 = arith.addf %25, %24 : vector<1x256xf32>
      %27 = arith.divf %25, %26 : vector<1x256xf32>
      %c0_15 = arith.constant 0 : index
      %c0_16 = arith.constant 0 : index
      %28 = vector.load %arg20[%c0_15, %c0_16] : memref<4x1xf32, #tpu.memory_space<vmem>>, vector<4x1xf32>
      %29 = vector.broadcast %28 : vector<4x1xf32> to vector<4x256xf32>
      %30 = vector.broadcast %27 : vector<1x256xf32> to vector<4x256xf32>
      %31 = arith.addf %29, %30 : vector<4x256xf32>
      %32 = arith.mulf %17, %31 : vector<4x256xf32>
      %c0_17 = arith.constant 0 : index
      %c0_18 = arith.constant 0 : index
      %c0_19 = arith.constant 0 : index
      %33 = vector.load %arg15[%c0_17, %c0_18, %c0_19] : memref<1x4x256xf32, #tpu.memory_space<vmem>>, vector<1x4x256xf32>
      %34 = vector.shape_cast %33 : vector<1x4x256xf32> to vector<4x256xf32>
      %35 = vector.shape_cast %32 : vector<4x256xf32> to vector<1x4x256xf32>
      tpu.vector_store %arg15[%c0_17, %c0_18, %c0_19], %35 {strides = array<i32>} : memref<1x4x256xf32, #tpu.memory_space<vmem>>, vector<1x4x256xf32>,
    } else {
    }
    return
  }
  func.func @transform_0(%arg0: i32, %arg1: i32, %arg2: i32) -> (i32, i32, i32) {
    %c0_i32 = arith.constant 0 : i32
    %c0_i32_0 = arith.constant 0 : i32
    return %arg0, %c0_i32, %arg2 : i32, i32, i32
  }
  func.func @transform_1(%arg0: i32, %arg1: i32, %arg2: i32) -> (i32, i32) {
    %c0_i32 = arith.constant 0 : i32
    %c0_i32_0 = arith.constant 0 : i32
    %c0_i32_1 = arith.constant 0 : i32
    return %c0_i32, %c0_i32_0 : i32, i32
  }
  func.func @transform_2(%arg0: i32, %arg1: i32, %arg2: i32) -> (i32, i32) {
    %c0_i32 = arith.constant 0 : i32
    %c0_i32_0 = arith.constant 0 : i32
    %c0_i32_1 = arith.constant 0 : i32
    return %c0_i32, %c0_i32_0 : i32, i32
  }
  func.func @transform_3(%arg0: i32, %arg1: i32, %arg2: i32) -> (i32, i32) {
    %c0_i32 = arith.constant 0 : i32
    %c0_i32_0 = arith.constant 0 : i32
    %c0_i32_1 = arith.constant 0 : i32
    return %c0_i32, %c0_i32_0 : i32, i32
  }
  func.func @transform_4(%arg0: i32, %arg1: i32, %arg2: i32) -> (i32, i32) {
    %c0_i32 = arith.constant 0 : i32
    %c0_i32_0 = arith.constant 0 : i32
    %c0_i32_1 = arith.constant 0 : i32
    return %c0_i32, %c0_i32_0 : i32, i32
  }
  func.func @transform_5(%arg0: i32, %arg1: i32, %arg2: i32) -> (i32, i32) {
    %c0_i32 = arith.constant 0 : i32
    %c0_i32_0 = arith.constant 0 : i32
    %c0_i32_1 = arith.constant 0 : i32
    return %c0_i32, %c0_i32_0 : i32, i32
  }
  func.func @transform_6(%arg0: i32, %arg1: i32, %arg2: i32) -> (i32, i32) {
    %c0_i32 = arith.constant 0 : i32
    %c0_i32_0 = arith.constant 0 : i32
    %c0_i32_1 = arith.constant 0 : i32
    return %c0_i32, %c0_i32_0 : i32, i32
  }
  func.func @transform_7(%arg0: i32, %arg1: i32, %arg2: i32) -> (i32, i32) {
    %c0_i32 = arith.constant 0 : i32
    %c0_i32_0 = arith.constant 0 : i32
    %c0_i32_1 = arith.constant 0 : i32
    return %c0_i32, %c0_i32_0 : i32, i32
  }
  func.func @transform_8(%arg0: i32, %arg1: i32, %arg2: i32) -> (i32, i32) {
    %c0_i32 = arith.constant 0 : i32
    %c0_i32_0 = arith.constant 0 : i32
    %c0_i32_1 = arith.constant 0 : i32
    return %c0_i32, %c0_i32_0 : i32, i32
  }
  func.func @transform_9(%arg0: i32, %arg1: i32, %arg2: i32) -> (i32, i32) {
    %c0_i32 = arith.constant 0 : i32
    %c0_i32_0 = arith.constant 0 : i32
    %c0_i32_1 = arith.constant 0 : i32
    return %c0_i32, %c0_i32_0 : i32, i32
  }
  func.func @transform_10(%arg0: i32, %arg1: i32, %arg2: i32) -> (i32, i32) {
    %c0_i32 = arith.constant 0 : i32
    %c0_i32_0 = arith.constant 0 : i32
    %c0_i32_1 = arith.constant 0 : i32
    return %c0_i32, %c0_i32_0 : i32, i32
  }
  func.func @transform_11(%arg0: i32, %arg1: i32, %arg2: i32) -> (i32, i32) {
    %c0_i32 = arith.constant 0 : i32
    %c0_i32_0 = arith.constant 0 : i32
    %c0_i32_1 = arith.constant 0 : i32
    return %c0_i32, %c0_i32_0 : i32, i32
  }
  func.func @transform_12(%arg0: i32, %arg1: i32, %arg2: i32) -> (i32, i32, i32) {
    %0 = arith.muli %arg1, %arg2 : i32
    %c0_i32 = arith.constant 0 : i32
    %c0_i32_0 = arith.constant 0 : i32
    return %arg0, %c0_i32, %0 : i32, i32, i32
  }
}

</mosaic_0001>

<llo_original>
// kernel: tpu_custom_call.1
$region0: #{tpu_custom_call.1}
  #allocation0 [shape = 'u32[]', space=smem, size = 0x4, offset = 0x4, fixed_abs, tag = 'smem constant byte address 0x4 - core index']
  #allocation1 [shape = 'u32[144,128]{1,0:T(1,128)}', space=vmem, size = 0x12000, scoped, tag = 'internal scratch']
  #allocation2 [shape = 'f32[1,1]{1,0:T(1,128)}', space=vmem, size = 0x200, scoped, tag = 'scratch operand']
  #allocation3 [shape = 'f32[1,1]{1,0:T(1,128)}', space=vmem, size = 0x200, scoped, tag = 'scratch operand']
  #allocation4 [shape = 'f32[4,1]{1,0:T(4,128)}', space=vmem, size = 0x800, scoped, tag = 'scratch operand']
  #allocation5 [shape = 'f32[4,1]{1,0:T(4,128)}', space=vmem, size = 0x800, scoped, tag = 'scratch operand']
  #allocation6 [shape = 'f32[4,1]{1,0:T(4,128)}', space=vmem, size = 0x800, scoped, tag = 'scratch operand']
  #allocation7 [shape = 'f32[1,4]{1,0:T(1,128)}', space=vmem, size = 0x200, scoped, tag = 'scratch operand']
  #allocation8 [shape = 'f32[1,1]{1,0:T(1,128)}', space=vmem, size = 0x200, scoped, tag = 'scratch operand']
  #allocation9 [shape = 'f32[1,1]{1,0:T(1,128)S(1)}', space=vmem, size = 0x200, scoped, tag = 'scoped memory for tpu_custom_call.1']
  %s0 = inlined_call_operand.vmem [shape: f32[2,4,256], index: 0, kind: input, shape index: {}]
  %s1 = inlined_call_operand.vmem [shape: f32[1,4], index: 1, kind: input, shape index: {}]
  %s2 = inlined_call_operand.<no memory space> [shape: f32[1,1], index: 2, kind: input, shape index: {}]
  %s3 = inlined_call_operand.vmem [shape: f32[2,4], index: 3, kind: input, shape index: {}]
  %s4 = inlined_call_operand.vmem [shape: f32[2,1], index: 4, kind: input, shape index: {}]
  %s5 = inlined_call_operand.vmem [shape: f32[4,2], index: 5, kind: input, shape index: {}]
  %s6 = inlined_call_operand.vmem [shape: f32[4,1], index: 6, kind: input, shape index: {}]
  %s7 = inlined_call_operand.vmem [shape: f32[4,1], index: 7, kind: input, shape index: {}]
  %s8 = inlined_call_operand.vmem [shape: f32[2,4], index: 8, kind: input, shape index: {}]
  %s9 = inlined_call_operand.vmem [shape: f32[2,1], index: 9, kind: input, shape index: {}]
  %s10 = inlined_call_operand.vmem [shape: f32[2,4], index: 10, kind: input, shape index: {}]
  %s11 = inlined_call_operand.vmem [shape: f32[2,1], index: 11, kind: input, shape index: {}]
  %s12 = inlined_call_operand.hbm [shape: f32[2,4,256], index: 12, kind: output, shape index: {}]
  %s13 = sld [smem:[#allocation0]]
  $region97: #{tpu_custom_call.1} parent=0
    _
  %s15 = ssub.s32 1, %s13
  %s16 = scalar_select 0, %s15, %s13
  %v17 = vstv %s2
  %18 = vst [vmem:[#allocation9] sm:$0x1] %v17
  $region1: #{tpu_custom_call.1} parent=0
    #allocation10 [shape = 'u8[8192]{0}', space=vmem, size = 0x2000, scoped, tag = 'output window, operand 0']
    #allocation11 [shape = 's32[2]{0}', space=sflag, size = 0x8, scoped, tag = 'scoped memory for tpu_custom_call.1']
    %19 = vsyncpa [#allocation11], 0
    %s20 = scalar_lea.sflag [#allocation11], 1
    %21 = vsyncpa %s20, 0
    loop: start=0, step=1, limit=6
    $region2: #{tpu_custom_call.1} parent=1 // loop_pre_header
      _
    $region3: #{tpu_custom_call.1} parent=1 // loop_header
      %s23 = sphi 0, %s27
      %p24 = scmp.ge.s32.totalorder %s23, 6
      %s30 = sphi 0, %s49
      %s31 = sphi 0, %s45
      %s32 = sphi 0, %s41
      %s33 = sphi 0, %s30
      %s34 = sphi 0, %s31
      %s35 = sphi 0, %s32
      %s36 = sphi 0, %s33
      %s37 = sphi 0, %s34
      %s38 = sphi 0, %s35
      %s54 = sphi 0, %s56
      %s57 = sphi 0, %s54
      %s58 = sphi 0, %s57
      %s74 = sphi 0, %s58
      %s78 = sphi 0, %s78
      %s80 = sphi 0, %s78
      %s81 = sphi 0, %s80
      %s95 = sphi 0, %s81
      %s99 = sphi 0, %s99
      %s101 = sphi 0, %s99
      %s102 = sphi 0, %s101
      %s116 = sphi 0, %s102
      %s120 = sphi 0, %s120
      %s122 = sphi 0, %s120
      %s123 = sphi 0, %s122
      %s137 = sphi 0, %s123
      %s141 = sphi 0, %s141
      %s143 = sphi 0, %s141
      %s144 = sphi 0, %s143
      %s158 = sphi 0, %s144
      %s162 = sphi 0, %s162
      %s164 = sphi 0, %s162
      %s165 = sphi 0, %s164
      %s179 = sphi 0, %s165
      %s183 = sphi 0, %s183
      %s185 = sphi 0, %s183
      %s186 = sphi 0, %s185
      %s200 = sphi 0, %s186
      %s204 = sphi 0, %s204
      %s206 = sphi 0, %s204
      %s207 = sphi 0, %s206
      %s221 = sphi 0, %s207
      %s225 = sphi 0, %s225
      %s227 = sphi 0, %s225
      %s228 = sphi 0, %s227
      %s242 = sphi 0, %s228
      %s246 = sphi 0, %s246
      %s248 = sphi 0, %s246
      %s249 = sphi 0, %s248
      %s263 = sphi 0, %s249
      %s267 = sphi 0, %s267
      %s269 = sphi 0, %s267
      %s270 = sphi 0, %s269
      %s284 = sphi 0, %s270
      %s288 = sphi 0, %s288
      %s290 = sphi 0, %s288
      %s291 = sphi 0, %s290
      %s305 = sphi 0, %s291
      %s315 = sphi 0, %s317
      %s318 = sphi 0, %s315
      %s319 = sphi 0, %s318
      %s335 = sphi 0, %s319
    $region4: #{tpu_custom_call.1} parent=1 // loop_header_branch
      %26 = sbr.rel (%p24) target = $region8
    $region5: #{tpu_custom_call.1} parent=1 // loop_body
      %s28 = ssub.s32 %s23, 1
      %s29 = ssub.s32 %s23, 2
      %s39 = sadd.s32 1, %s32
      %p40 = scmp.ge.s32.totalorder %s39, 1
      %s41 = scalar_select %p40, 0, %s39
      %s42 = sadd.s32 1, %s31
      %s43 = scalar_select %p40, %s42, %s31
      %p44 = scmp.ge.s32.totalorder %s43, 2
      %s45 = scalar_select %p44, 0, %s43
      %s46 = sadd.s32 1, %s30
      %s47 = scalar_select %p44, %s46, %s30
      %p48 = scmp.ge.s32.totalorder %s47, 2
      %s49 = scalar_select %p48, 0, %s47
      %s50 = ssub.s32 %s30, %s49
      %s51 = ssub.s32 %s32, %s41
      %s52 = sor.u32 %s50, %s51
      %p53 = scmp.eq.s32.totalorder %s52, 0
      %s55 = sadd.s32 %s54, 1
      %s56 = scalar_select %p53, %s54, %s55
      %p59 = pneg %p53
      %p60 = scmp.eq.s32.totalorder %s23, 3
      %p61 = por %p59, %p60
      %p62 = scmp.ne.s32.totalorder %s54, %s57
      %p63 = scmp.eq.s32.totalorder %s23, 0
      %p64 = por %p62, %p63
      %p65 = scmp.ne.s32.totalorder %s54, %s57
      %p66 = scmp.eq.s32.totalorder %s28, 3
      %p67 = por %p65, %p66
      %p68 = scmp.ne.s32.totalorder %s57, %s58
      %p69 = scmp.eq.s32.totalorder %s28, 0
      %p70 = por %p68, %p69
      %p71 = scmp.ne.s32.totalorder %s57, %s58
      %p72 = scmp.eq.s32.totalorder %s29, 3
      %p73 = por %p71, %p72
      %p75 = scmp.ne.s32.totalorder %s58, %s74
      %p76 = scmp.eq.s32.totalorder %s29, 0
      %p77 = por %p75, %p76
      %s79 = sadd.s32 %s78, 1
      %p82 = scmp.eq.s32.totalorder %s23, 3
      %p83 = scmp.ne.s32.totalorder %s78, %s80
      %p84 = scmp.eq.s32.totalorder %s23, 0
      %p85 = por %p83, %p84
      %p86 = scmp.ne.s32.totalorder %s78, %s80
      %p87 = scmp.eq.s32.totalorder %s28, 3
      %p88 = por %p86, %p87
      %p89 = scmp.ne.s32.totalorder %s80, %s81
      %p90 = scmp.eq.s32.totalorder %s28, 0
      %p91 = por %p89, %p90
      %p92 = scmp.ne.s32.totalorder %s80, %s81
      %p93 = scmp.eq.s32.totalorder %s29, 3
      %p94 = por %p92, %p93
      %p96 = scmp.ne.s32.totalorder %s81, %s95
      %p97 = scmp.eq.s32.totalorder %s29, 0
      %p98 = por %p96, %p97
      %s100 = sadd.s32 %s99, 1
      %p103 = scmp.eq.s32.totalorder %s23, 3
      %p104 = scmp.ne.s32.totalorder %s99, %s101
      %p105 = scmp.eq.s32.totalorder %s23, 0
      %p106 = por %p104, %p105
      %p107 = scmp.ne.s32.totalorder %s99, %s101
      %p108 = scmp.eq.s32.totalorder %s28, 3
      %p109 = por %p107, %p108
      %p110 = scmp.ne.s32.totalorder %s101, %s102
      %p111 = scmp.eq.s32.totalorder %s28, 0
      %p112 = por %p110, %p111
      %p113 = scmp.ne.s32.totalorder %s101, %s102
      %p114 = scmp.eq.s32.totalorder %s29, 3
      %p115 = por %p113, %p114
      %p117 = scmp.ne.s32.totalorder %s102, %s116
      %p118 = scmp.eq.s32.totalorder %s29, 0
      %p119 = por %p117, %p118
      %s121 = sadd.s32 %s120, 1
      %p124 = scmp.eq.s32.totalorder %s23, 3
      %p125 = scmp.ne.s32.totalorder %s120, %s122
      %p126 = scmp.eq.s32.totalorder %s23, 0
      %p127 = por %p125, %p126
      %p128 = scmp.ne.s32.totalorder %s120, %s122
      %p129 = scmp.eq.s32.totalorder %s28, 3
      %p130 = por %p128, %p129
      %p131 = scmp.ne.s32.totalorder %s122, %s123
      %p132 = scmp.eq.s32.totalorder %s28, 0
      %p133 = por %p131, %p132
      %p134 = scmp.ne.s32.totalorder %s122, %s123
      %p135 = scmp.eq.s32.totalorder %s29, 3
      %p136 = por %p134, %p135
      %p138 = scmp.ne.s32.totalorder %s123, %s137
      %p139 = scmp.eq.s32.totalorder %s29, 0
      %p140 = por %p138, %p139
      %s142 = sadd.s32 %s141, 1
      %p145 = scmp.eq.s32.totalorder %s23, 3
      %p146 = scmp.ne.s32.totalorder %s141, %s143
      %p147 = scmp.eq.s32.totalorder %s23, 0
      %p148 = por %p146, %p147
      %p149 = scmp.ne.s32.totalorder %s141, %s143
      %p150 = scmp.eq.s32.totalorder %s28, 3
      %p151 = por %p149, %p150
      %p152 = scmp.ne.s32.totalorder %s143, %s144
      %p153 = scmp.eq.s32.totalorder %s28, 0
      %p154 = por %p152, %p153
      %p155 = scmp.ne.s32.totalorder %s143, %s144
      %p156 = scmp.eq.s32.totalorder %s29, 3
      %p157 = por %p155, %p156
      %p159 = scmp.ne.s32.totalorder %s144, %s158
      %p160 = scmp.eq.s32.totalorder %s29, 0
      %p161 = por %p159, %p160
      %s163 = sadd.s32 %s162, 1
      %p166 = scmp.eq.s32.totalorder %s23, 3
      %p167 = scmp.ne.s32.totalorder %s162, %s164
      %p168 = scmp.eq.s32.totalorder %s23, 0
      %p169 = por %p167, %p168
      %p170 = scmp.ne.s32.totalorder %s162, %s164
      %p171 = scmp.eq.s32.totalorder %s28, 3
      %p172 = por %p170, %p171
      %p173 = scmp.ne.s32.totalorder %s164, %s165
      %p174 = scmp.eq.s32.totalorder %s28, 0
      %p175 = por %p173, %p174
      %p176 = scmp.ne.s32.totalorder %s164, %s165
      %p177 = scmp.eq.s32.totalorder %s29, 3
      %p178 = por %p176, %p177
      %p180 = scmp.ne.s32.totalorder %s165, %s179
      %p181 = scmp.eq.s32.totalorder %s29, 0
      %p182 = por %p180, %p181
      %s184 = sadd.s32 %s183, 1
      %p187 = scmp.eq.s32.totalorder %s23, 3
      %p188 = scmp.ne.s32.totalorder %s183, %s185
      %p189 = scmp.eq.s32.totalorder %s23, 0
      %p190 = por %p188, %p189
      %p191 = scmp.ne.s32.totalorder %s183, %s185
      %p192 = scmp.eq.s32.totalorder %s28, 3
      %p193 = por %p191, %p192
      %p194 = scmp.ne.s32.totalorder %s185, %s186
      %p195 = scmp.eq.s32.totalorder %s28, 0
      %p196 = por %p194, %p195
      %p197 = scmp.ne.s32.totalorder %s185, %s186
      %p198 = scmp.eq.s32.totalorder %s29, 3
      %p199 = por %p197, %p198
      %p201 = scmp.ne.s32.totalorder %s186, %s200
      %p202 = scmp.eq.s32.totalorder %s29, 0
      %p203 = por %p201, %p202
      %s205 = sadd.s32 %s204, 1
      %p208 = scmp.eq.s32.totalorder %s23, 3
      %p209 = scmp.ne.s32.totalorder %s204, %s206
      %p210 = scmp.eq.s32.totalorder %s23, 0
      %p211 = por %p209, %p210
      %p212 = scmp.ne.s32.totalorder %s204, %s206
      %p213 = scmp.eq.s32.totalorder %s28, 3
      %p214 = por %p212, %p213
      %p215 = scmp.ne.s32.totalorder %s206, %s207
      %p216 = scmp.eq.s32.totalorder %s28, 0
      %p217 = por %p215, %p216
      %p218 = scmp.ne.s32.totalorder %s206, %s207
      %p219 = scmp.eq.s32.totalorder %s29, 3
      %p220 = por %p218, %p219
      %p222 = scmp.ne.s32.totalorder %s207, %s221
      %p223 = scmp.eq.s32.totalorder %s29, 0
      %p224 = por %p222, %p223
      %s226 = sadd.s32 %s225, 1
      %p229 = scmp.eq.s32.totalorder %s23, 3
      %p230 = scmp.ne.s32.totalorder %s225, %s227
      %p231 = scmp.eq.s32.totalorder %s23, 0
      %p232 = por %p230, %p231
      %p233 = scmp.ne.s32.totalorder %s225, %s227
      %p234 = scmp.eq.s32.totalorder %s28, 3
      %p235 = por %p233, %p234
      %p236 = scmp.ne.s32.totalorder %s227, %s228
      %p237 = scmp.eq.s32.totalorder %s28, 0
      %p238 = por %p236, %p237
      %p239 = scmp.ne.s32.totalorder %s227, %s228
      %p240 = scmp.eq.s32.totalorder %s29, 3
      %p241 = por %p239, %p240
      %p243 = scmp.ne.s32.totalorder %s228, %s242
      %p244 = scmp.eq.s32.totalorder %s29, 0
      %p245 = por %p243, %p244
      %s247 = sadd.s32 %s246, 1
      %p250 = scmp.eq.s32.totalorder %s23, 3
      %p251 = scmp.ne.s32.totalorder %s246, %s248
      %p252 = scmp.eq.s32.totalorder %s23, 0
      %p253 = por %p251, %p252
      %p254 = scmp.ne.s32.totalorder %s246, %s248
      %p255 = scmp.eq.s32.totalorder %s28, 3
      %p256 = por %p254, %p255
      %p257 = scmp.ne.s32.totalorder %s248, %s249
      %p258 = scmp.eq.s32.totalorder %s28, 0
      %p259 = por %p257, %p258
      %p260 = scmp.ne.s32.totalorder %s248, %s249
      %p261 = scmp.eq.s32.totalorder %s29, 3
      %p262 = por %p260, %p261
      %p264 = scmp.ne.s32.totalorder %s249, %s263
      %p265 = scmp.eq.s32.totalorder %s29, 0
      %p266 = por %p264, %p265
      %s268 = sadd.s32 %s267, 1
      %p271 = scmp.eq.s32.totalorder %s23, 3
      %p272 = scmp.ne.s32.totalorder %s267, %s269
      %p273 = scmp.eq.s32.totalorder %s23, 0
      %p274 = por %p272, %p273
      %p275 = scmp.ne.s32.totalorder %s267, %s269
      %p276 = scmp.eq.s32.totalorder %s28, 3
      %p277 = por %p275, %p276
      %p278 = scmp.ne.s32.totalorder %s269, %s270
      %p279 = scmp.eq.s32.totalorder %s28, 0
      %p280 = por %p278, %p279
      %p281 = scmp.ne.s32.totalorder %s269, %s270
      %p282 = scmp.eq.s32.totalorder %s29, 3
      %p283 = por %p281, %p282
      %p285 = scmp.ne.s32.totalorder %s270, %s284
      %p286 = scmp.eq.s32.totalorder %s29, 0
      %p287 = por %p285, %p286
      %s289 = sadd.s32 %s288, 1
      %p292 = scmp.eq.s32.totalorder %s23, 3
      %p293 = scmp.ne.s32.totalorder %s288, %s290
      %p294 = scmp.eq.s32.totalorder %s23, 0
      %p295 = por %p293, %p294
      %p296 = scmp.ne.s32.totalorder %s288, %s290
      %p297 = scmp.eq.s32.totalorder %s28, 3
      %p298 = por %p296, %p297
      %p299 = scmp.ne.s32.totalorder %s290, %s291
      %p300 = scmp.eq.s32.totalorder %s28, 0
      %p301 = por %p299, %p300
      %p302 = scmp.ne.s32.totalorder %s290, %s291
      %p303 = scmp.eq.s32.totalorder %s29, 3
      %p304 = por %p302, %p303
      %p306 = scmp.ne.s32.totalorder %s291, %s305
      %p307 = scmp.eq.s32.totalorder %s29, 0
      %p308 = por %p306, %p307
      %s309 = smul.u32 %s31, %s32
      %s310 = smul.u32 %s45, %s41
      %s311 = ssub.s32 %s30, %s49
      %s312 = ssub.s32 %s309, %s310
      %s313 = sor.u32 %s311, %s312
      %p314 = scmp.eq.s32.totalorder %s313, 0
      %s316 = sadd.s32 %s315, 1
      %s317 = scalar_select %p314, %s315, %s316
      %p320 = pneg %p314
      %p321 = scmp.eq.s32.totalorder %s23, 3
      %p322 = por %p320, %p321
      %p323 = scmp.ne.s32.totalorder %s315, %s318
      %p324 = scmp.eq.s32.totalorder %s23, 0
      %p325 = por %p323, %p324
      %p326 = scmp.ne.s32.totalorder %s315, %s318
      %p327 = scmp.eq.s32.totalorder %s28, 3
      %p328 = por %p326, %p327
      %p329 = scmp.ne.s32.totalorder %s318, %s319
      %p330 = scmp.eq.s32.totalorder %s28, 0
      %p331 = por %p329, %p330
      %p332 = scmp.ne.s32.totalorder %s318, %s319
      %p333 = scmp.eq.s32.totalorder %s29, 3
      %p334 = por %p332, %p333
      %p336 = scmp.ne.s32.totalorder %s319, %s335
      %p337 = scmp.eq.s32.totalorder %s29, 0
      %p338 = por %p336, %p337
      %p339 = scmp.le.s32.totalorder 1, %s23
      %p340 = scmp.lt.s32.totalorder %s23, 5
      %p341 = pnand %p339, %p340
      %p342 = pneg %p341
      // Predicated region
      $region9: #{tpu_custom_call.1} parent=5 // pred_check
        _
      $region10: #{tpu_custom_call.1} parent=5 // pred_check_branch
        %344 = sbr.rel (%p341) target = $region12
      $region11: #{tpu_custom_call.1} parent=5 // pred_region
        %s345 = ssub.s32 %s23, 1
        // Predicated region
        $region13: #{tpu_custom_call.1} parent=11 // pred_check
          %p346 = pneg %p91
        $region14: #{tpu_custom_call.1} parent=11 // pred_check_branch
          %348 = sbr.rel (%p346) target = $region16
        $region15: #{tpu_custom_call.1} parent=11 // pred_region
          _
        $region16: #{tpu_custom_call.1} parent=11 // pred_fallthru
          _
        // Predicated region
        $region17: #{tpu_custom_call.1} parent=11 // pred_check
          %p349 = pneg %p112
        $region18: #{tpu_custom_call.1} parent=11 // pred_check_branch
          %351 = sbr.rel (%p349) target = $region20
        $region19: #{tpu_custom_call.1} parent=11 // pred_region
          _
        $region20: #{tpu_custom_call.1} parent=11 // pred_fallthru
          _
        // Predicated region
        $region21: #{tpu_custom_call.1} parent=11 // pred_check
          %p352 = pneg %p133
        $region22: #{tpu_custom_call.1} parent=11 // pred_check_branch
          %354 = sbr.rel (%p352) target = $region24
        $region23: #{tpu_custom_call.1} parent=11 // pred_region
          _
        $region24: #{tpu_custom_call.1} parent=11 // pred_fallthru
          _
        // Predicated region
        $region25: #{tpu_custom_call.1} parent=11 // pred_check
          %p355 = pneg %p154
        $region26: #{tpu_custom_call.1} parent=11 // pred_check_branch
          %357 = sbr.rel (%p355) target = $region28
        $region27: #{tpu_custom_call.1} parent=11 // pred_region
          _
        $region28: #{tpu_custom_call.1} parent=11 // pred_fallthru
          _
        // Predicated region
        $region29: #{tpu_custom_call.1} parent=11 // pred_check
          %p358 = pneg %p175
        $region30: #{tpu_custom_call.1} parent=11 // pred_check_branch
          %360 = sbr.rel (%p358) target = $region32
        $region31: #{tpu_custom_call.1} parent=11 // pred_region
          _
        $region32: #{tpu_custom_call.1} parent=11 // pred_fallthru
          _
        // Predicated region
        $region33: #{tpu_custom_call.1} parent=11 // pred_check
          %p361 = pneg %p196
        $region34: #{tpu_custom_call.1} parent=11 // pred_check_branch
          %363 = sbr.rel (%p361) target = $region36
        $region35: #{tpu_custom_call.1} parent=11 // pred_region
          _
        $region36: #{tpu_custom_call.1} parent=11 // pred_fallthru
          _
        // Predicated region
        $region37: #{tpu_custom_call.1} parent=11 // pred_check
          %p364 = pneg %p217
        $region38: #{tpu_custom_call.1} parent=11 // pred_check_branch
          %366 = sbr.rel (%p364) target = $region40
        $region39: #{tpu_custom_call.1} parent=11 // pred_region
          _
        $region40: #{tpu_custom_call.1} parent=11 // pred_fallthru
          _
        // Predicated region
        $region41: #{tpu_custom_call.1} parent=11 // pred_check
          %p367 = pneg %p238
        $region42: #{tpu_custom_call.1} parent=11 // pred_check_branch
          %369 = sbr.rel (%p367) target = $region44
        $region43: #{tpu_custom_call.1} parent=11 // pred_region
          _
        $region44: #{tpu_custom_call.1} parent=11 // pred_fallthru
          _
        // Predicated region
        $region45: #{tpu_custom_call.1} parent=11 // pred_check
          %p370 = pneg %p259
        $region46: #{tpu_custom_call.1} parent=11 // pred_check_branch
          %372 = sbr.rel (%p370) target = $region48
        $region47: #{tpu_custom_call.1} parent=11 // pred_region
          _
        $region48: #{tpu_custom_call.1} parent=11 // pred_fallthru
          _
        // Predicated region
        $region49: #{tpu_custom_call.1} parent=11 // pred_check
          %p373 = pneg %p280
        $region50: #{tpu_custom_call.1} parent=11 // pred_check_branch
          %375 = sbr.rel (%p373) target = $region52
        $region51: #{tpu_custom_call.1} parent=11 // pred_region
          _
        $region52: #{tpu_custom_call.1} parent=11 // pred_fallthru
          _
        // Predicated region
        $region53: #{tpu_custom_call.1} parent=11 // pred_check
          %p376 = pneg %p301
        $region54: #{tpu_custom_call.1} parent=11 // pred_check_branch
          %378 = sbr.rel (%p376) target = $region56
        $region55: #{tpu_custom_call.1} parent=11 // pred_region
          _
        $region56: #{tpu_custom_call.1} parent=11 // pred_fallthru
          _
      $region12: #{tpu_custom_call.1} parent=5 // pred_fallthru
        _
      %p379 = scmp.lt.s32.totalorder %s23, 4
      // Predicated region
      $region57: #{tpu_custom_call.1} parent=5 // pred_check
        %p380 = pneg %p379
      $region58: #{tpu_custom_call.1} parent=5 // pred_check_branch
        %382 = sbr.rel (%p380) target = $region60
      $region59: #{tpu_custom_call.1} parent=5 // pred_region
        // Predicated region
        $region61: #{tpu_custom_call.1} parent=59 // pred_check
          %p383 = pneg %p64
        $region62: #{tpu_custom_call.1} parent=59 // pred_check_branch
          %385 = sbr.rel (%p383) target = $region64
        $region63: #{tpu_custom_call.1} parent=59 // pred_region
          %s386 = smul.u32 2, %s32
          %p387 = scmp.lt.s32.totalorder %s30, 1
          %s388 = scalar_select %p387, %s30, 1
          %p389 = scmp.lt.s32.totalorder %s386, 1
          %s390 = scalar_select %p389, %s386, 1
          %s391 = smul.addr %s388, 2
          %s392 = sadd.s32 %s390, %s391
          %s393 = smul.addr %s392, 4
          %s394 = scalar_lea.vmem %s0, %s393
          %s395 = smul.u32 2, %s32
        $region64: #{tpu_custom_call.1} parent=59 // pred_fallthru
          _
      $region60: #{tpu_custom_call.1} parent=5 // pred_fallthru
        _
      %p396 = scmp.le.s32.totalorder 1, %s23
      %p397 = scmp.lt.s32.totalorder %s23, 5
      %p398 = pnand %p396, %p397
      %p399 = pneg %p398
      // Predicated region
      $region65: #{tpu_custom_call.1} parent=5 // pred_check
        _
      $region66: #{tpu_custom_call.1} parent=5 // pred_check_branch
        %401 = sbr.rel (%p398) target = $region68
      $region67: #{tpu_custom_call.1} parent=5 // pred_region
        %s402 = ssub.s32 %s23, 1
        %s403 = smul.u32 2, %s35
        %p404 = scmp.lt.s32.totalorder %s33, 1
        %s405 = scalar_select %p404, %s33, 1
        %p406 = scmp.lt.s32.totalorder %s403, 1
        %s407 = scalar_select %p406, %s403, 1
        %s408 = smul.addr %s405, 2
        %s409 = sadd.s32 %s407, %s408
        %s410 = smul.addr %s409, 4
        %s411 = scalar_lea.vmem %s0, %s410
        %p412 = pneg %p70
        %p413 = pneg %p67
        %p414 = pneg %p91
        %p415 = pneg %p88
        %p416 = pneg %p112
        %p417 = pneg %p109
        %p418 = pneg %p133
        %p419 = pneg %p130
        %p420 = pneg %p154
        %p421 = pneg %p151
        %p422 = pneg %p175
        %p423 = pneg %p172
        %p424 = pneg %p196
        %p425 = pneg %p193
        %p426 = pneg %p217
        %p427 = pneg %p214
        %p428 = pneg %p238
        %p429 = pneg %p235
        %p430 = pneg %p259
        %p431 = pneg %p256
        %p432 = pneg %p280
        %p433 = pneg %p277
        %p434 = pneg %p301
        %p435 = pneg %p298
        %p436 = pneg %p331
        %p437 = pneg %p328
        %s438 = sand.u32 %s318, 1
        %s439 = scalar_lea.sflag [#allocation11], %s438
        %s440 = sand.u32 %s318, 1
        %s441 = smul.addr %s440, 8
        %s442 = scalar_lea.vmem [#allocation10], %s441
        %s443 = smul.u32 2, %s35
        %p444 = scmp.lt.s32.totalorder %s33, 1
        %s445 = scalar_select %p444, %s33, 1
        %p446 = scmp.lt.s32.totalorder %s443, 1
        %s447 = scalar_select %p446, %s443, 1
        %s448 = smul.addr %s445, 2
        %s449 = sadd.s32 %s447, %s448
        %s450 = smul.addr %s449, 4
        %s451 = scalar_lea.vmem %s0, %s450
        %s452 = smul.u32 2, %s35
        %s453 = smul.u32 %s34, %s35
        %s454 = smul.u32 2, %s453
        %p455 = scmp.eq.s32.totalorder %s34, 0
        %p456 = scmp.eq.s32.totalorder %s35, 0
        %p457 = pnand %p455, %p456
        %p458 = pneg %p457
        // Predicated region
        $region69: #{tpu_custom_call.1} parent=67 // pred_check
          _
        $region70: #{tpu_custom_call.1} parent=67 // pred_check_branch
          %460 = sbr.rel (%p457) target = $region72
        $region71: #{tpu_custom_call.1} parent=67 // pred_region
          %vm461 = vcmask 0
          %462 = vst.msk [vmem:[#allocation2] sm:$0x1] %vm461, -inf
          %463 = vst.msk [vmem:[#allocation3] sm:$0x1] %vm461, 0.0
          %vm464 = vcmask 3072
          %465 = vst.msk [vmem:[#allocation4] sm:$0xf] %vm464, 0.0
          %466 = vst.msk [vmem:[#allocation5] sm:$0xf] %vm464, 0.0
        $region72: #{tpu_custom_call.1} parent=67 // pred_fallthru
          _
        // Predicated region
        $region73: #{tpu_custom_call.1} parent=67 // pred_check
          %p467 = pneg %p455
        $region74: #{tpu_custom_call.1} parent=67 // pred_check_branch
          %469 = sbr.rel (%p467) target = $region76
        $region75: #{tpu_custom_call.1} parent=67 // pred_region
          %v470 = vld [vmem:[%s451] sm:$0xff]
          %v471 = vld [vmem:[%s1] sm:$0x1]
          %v472 = vld [vmem:[#allocation9] sm:$0x1]
          %474 = vset.pattern.permute.xlu0 0
          %475 = vperm.xlu0 %474, %v472
          %v476 = vpop.permute.xlu0 %475
          %v478 = vlaneseq
          %v479 = vshrl.u32 %v478, 7
          %v480 = vsub.s32 0, %v479
          %v481 = vrot.slane %v476, %v480
          %v483 = vcombine.high %v470, %v470
          %vm484 = vcmask 31744
          %v486 = vsel %vm484, %v471, 0
          %vm488 = vcmask 1043456
          %v489 = vsel %vm488, %v470, 0
          %v491 = vsel %vm488, %v483, 0
          %493 = vmatprep.subr.mxu0 %v491
          %494 = vmatpush1.msra.mxu0 %v489
          %495 = vmatprep.subr.mxu0 0.0
          %496 = vmatpush1.msra.mxu0 0.0
          %497 = vmatprep.subr.mxu0 0.0
          %498 = vmatpush1.msra.mxu0 0.0
          %499 = vmatprep.subr.mxu0 0.0
          %500 = vmatpush1.msra.mxu0 0.0
          %501 = vmatprep.subr.mxu0 0.0
          %502 = vmatpush1.msra.mxu0 0.0
          %503 = vmatprep.subr.mxu0 0.0
          %504 = vmatpush1.msra.mxu0 0.0
          %505 = vmatprep.subr.mxu0 0.0
          %506 = vmatpush1.msra.mxu0 0.0
          %507 = vmatprep.subr.mxu0 0.0
          %508 = vmatpush1.msra.mxu0 0.0
          %509 = vmatprep.subr.mxu0 0.0
          %510 = vmatpush1.msra.mxu0 0.0
          %511 = vmatprep.subr.mxu0 0.0
          %512 = vmatpush1.msra.mxu0 0.0
          %513 = vmatprep.subr.mxu0 0.0
          %514 = vmatpush1.msra.mxu0 0.0
          %515 = vmatprep.subr.mxu0 0.0
          %516 = vmatpush1.msra.mxu0 0.0
          %517 = vmatprep.subr.mxu0 0.0
          %518 = vmatpush1.msra.mxu0 0.0
          %519 = vmatprep.subr.mxu0 0.0
          %520 = vmatpush1.msra.mxu0 0.0
          %521 = vmatprep.subr.mxu0 0.0
          %522 = vmatpush1.msra.mxu0 0.0
          %523 = vmatprep.subr.mxu0 0.0
          %524 = vmatpush1.msra.mxu0 0.0
          %525 = vmatprep.subr.mxu0 0.0
          %526 = vmatpush1.msra.mxu0 0.0
          %527 = vmatprep.subr.mxu0 0.0
          %528 = vmatpush1.msra.mxu0 0.0
          %529 = vmatprep.subr.mxu0 0.0
          %530 = vmatpush1.msra.mxu0 0.0
          %531 = vmatprep.subr.mxu0 0.0
          %532 = vmatpush1.msra.mxu0 0.0
          %533 = vmatprep.subr.mxu0 0.0
          %534 = vmatpush1.msra.mxu0 0.0
          %535 = vmatprep.subr.mxu0 0.0
          %536 = vmatpush1.msra.mxu0 0.0
          %537 = vmatprep.subr.mxu0 0.0
          %538 = vmatpush1.msra.mxu0 0.0
          %539 = vmatprep.subr.mxu0 0.0
          %540 = vmatpush1.msra.mxu0 0.0
          %541 = vmatprep.subr.mxu0 0.0
          %542 = vmatpush1.msra.mxu0 0.0
          %543 = vmatprep.subr.mxu0 0.0
          %544 = vmatpush1.msra.mxu0 0.0
          %545 = vmatprep.subr.mxu0 0.0
          %546 = vmatpush1.msra.mxu0 0.0
          %547 = vmatprep.subr.mxu0 0.0
          %548 = vmatpush1.msra.mxu0 0.0
          %549 = vmatprep.subr.mxu0 0.0
          %550 = vmatpush1.msra.mxu0 0.0
          %551 = vmatprep.subr.mxu0 0.0
          %552 = vmatpush1.msra.mxu0 0.0
          %553 = vmatprep.subr.mxu0 0.0
          %554 = vmatpush1.msra.mxu0 0.0
          %555 = vmatprep.subr.mxu0 0.0
          %556 = vmatpush1.msra.mxu0 0.0
          %557 = vmatprep.mubr.f32.mxu0 0.0
          %558 = vmatmul.mubr.f32.gmra.mrb[0].mxu0 %v486
          %v559 = vpop.f32.mrb[0].mxu0
          %v560 = vadd.f32 %v481, %v559
          %v561 = vpop.f32.mrb[0].mxu0
          %v562 = vadd.f32 %v481, %v561
          %563 = vdwg.mxu0
          %v564 = vld [vmem:[#allocation2] sm:$0x1]
          %vm565 = vcmask 1040384
          %v566 = vsel %vm565, %v560, -inf
          %v567 = vsel %vm565, %v562, -inf
          %v568 = vmax.f32 %v566, %v567
          %569 = vmax.xlane.f32.xlu0 %v568
          %v570 = vpop.xlane.xlu0 %569
          %v571 = vmax.f32 %v564, %v570
          %v572 = vsub.f32 %v564, %v571
          %v573 = vmul.f32 %v572, 1.442695
          %v574 = vpow.pop %v573
          %576 = vset.pattern.permute.xlu0 0
          %577 = vperm.xlu0 %576, %v571
          %v578 = vpop.permute.xlu0 %577
          %v580 = vlaneseq
          %v581 = vshrl.u32 %v580, 7
          %v582 = vsub.s32 0, %v581
          %v583 = vrot.slane %v578, %v582
          %v584 = vsub.f32 %v560, %v583
          %v585 = vsub.f32 %v562, %v583
          %v586 = vmul.f32 %v584, 1.442695
          %v587 = vpow.pop %v586
          %v588 = vmul.f32 %v585, 1.442695
          %v589 = vpow.pop %v588
          %v590 = vld [vmem:[#allocation3] sm:$0x1]
          %v591 = vmul.f32 %v574, %v590
          %v592 = vsel %vm565, %v587, 0.0
          %v593 = vsel %vm565, %v589, 0.0
          %v594 = vadd.f32 %v592, %v593
          %595 = vadd.xlane.f32.xlu0 %v594
          %v596 = vpop.xlane.xlu0 %595
          %v597 = vadd.f32 %v591, %v596
          %vm598 = vcmask 0
          %599 = vst.msk [vmem:[#allocation3] sm:$0x1] %vm598, %v597
          %v600 = vlaneseq
          %v601 = vshrl.u32 %v600, 7
          %v602 = vsub.s32 0, %v601
          %v603 = vrot.slane %v587, %v602
          %v604 = vlaneseq
          %v605 = vshrl.u32 %v604, 7
          %v606 = vsub.s32 0, %v605
          %v607 = vrot.slane %v589, %v606
          %v610 = vcombine.low %v603, %v607
          %v612 = vmul.f32 %v470, %v610
          %v614 = vcombine.high %v612, %v612
          %v616 = vsel %vm488, %v612, 0.0
          %v617 = vsel %vm488, %v614, 0.0
          %v618 = vadd.f32 %v616, %v617
          %619 = vadd.xlane.f32.xlu0 %v618
          %v620 = vpop.xlane.xlu0 %619
          %v621 = vld [vmem:[#allocation4] sm:$0xf]
          %v623 = vlaneseq
          %v624 = vshrl.u32 %v623, 7
          %v625 = vsub.s32 0, %v624
          %v626 = vrot.slane %v574, %v625
          %v628 = vmul.f32 %v626, %v621
          %v629 = vadd.f32 %v628, %v620
          %vm630 = vcmask 3072
          %631 = vst.msk [vmem:[#allocation4] sm:$0xf] %vm630, %v629
          %v632 = vld [vmem:[#allocation5] sm:$0xf]
          %v634 = vsel %vm488, %v470, 0.0
          %v635 = vsel %vm488, %v483, 0.0
          %v636 = vadd.f32 %v634, %v635
          %637 = vadd.xlane.f32.xlu0 %v636
          %v638 = vpop.xlane.xlu0 %637
          %v639 = vadd.f32 %v632, %v638
          %640 = vst.msk [vmem:[#allocation5] sm:$0xf] %vm630, %v639
          %641 = vst.msk [vmem:[#allocation2] sm:$0x1] %vm598, %v571
        $region76: #{tpu_custom_call.1} parent=67 // pred_fallthru
          _
        %p642 = scmp.eq.s32.totalorder %s34, 1
        %p643 = pnand %p642, %p456
        %p644 = pneg %p643
        // Predicated region
        $region77: #{tpu_custom_call.1} parent=67 // pred_check
          _
        $region78: #{tpu_custom_call.1} parent=67 // pred_check_branch
          %646 = sbr.rel (%p643) target = $region80
        $region79: #{tpu_custom_call.1} parent=67 // pred_region
          %v647 = vld [vmem:[#allocation3] sm:$0x1]
          %v648 = vrcp.pop %v647
          %v649 = vld [vmem:[#allocation4] sm:$0xf]
          %v651 = vlaneseq
          %v652 = vshrl.u32 %v651, 7
          %v653 = vsub.s32 0, %v652
          %v654 = vrot.slane %v648, %v653
          %v656 = vmul.f32 %v649, %v654
          %v657 = vld [vmem:[%s3] sm:$0x3]
          %v658 = vld [vmem:[%s4] sm:$0x3]
          %vm659 = vcmask 31744
          %v661 = vsel %vm659, %v657, 0
          %vm663 = vcmask 1043456
          %v665 = vsel %vm663, %v656, 0
          %667 = vmatprep.subr.mxu0 0.0
          %668 = vmatpush1.msra.mxu0 %v665
          %669 = vmatprep.subr.mxu0 0.0
          %670 = vmatpush1.msra.mxu0 0.0
          %671 = vmatprep.subr.mxu0 0.0
          %672 = vmatpush1.msra.mxu0 0.0
          %673 = vmatprep.subr.mxu0 0.0
          %674 = vmatpush1.msra.mxu0 0.0
          %675 = vmatprep.subr.mxu0 0.0
          %676 = vmatpush1.msra.mxu0 0.0
          %677 = vmatprep.subr.mxu0 0.0
          %678 = vmatpush1.msra.mxu0 0.0
          %679 = vmatprep.subr.mxu0 0.0
          %680 = vmatpush1.msra.mxu0 0.0
          %681 = vmatprep.subr.mxu0 0.0
          %682 = vmatpush1.msra.mxu0 0.0
          %683 = vmatprep.subr.mxu0 0.0
          %684 = vmatpush1.msra.mxu0 0.0
          %685 = vmatprep.subr.mxu0 0.0
          %686 = vmatpush1.msra.mxu0 0.0
          %687 = vmatprep.subr.mxu0 0.0
          %688 = vmatpush1.msra.mxu0 0.0
          %689 = vmatprep.subr.mxu0 0.0
          %690 = vmatpush1.msra.mxu0 0.0
          %691 = vmatprep.subr.mxu0 0.0
          %692 = vmatpush1.msra.mxu0 0.0
          %693 = vmatprep.subr.mxu0 0.0
          %694 = vmatpush1.msra.mxu0 0.0
          %695 = vmatprep.subr.mxu0 0.0
          %696 = vmatpush1.msra.mxu0 0.0
          %697 = vmatprep.subr.mxu0 0.0
          %698 = vmatpush1.msra.mxu0 0.0
          %699 = vmatprep.subr.mxu0 0.0
          %700 = vmatpush1.msra.mxu0 0.0
          %701 = vmatprep.subr.mxu0 0.0
          %702 = vmatpush1.msra.mxu0 0.0
          %703 = vmatprep.subr.mxu0 0.0
          %704 = vmatpush1.msra.mxu0 0.0
          %705 = vmatprep.subr.mxu0 0.0
          %706 = vmatpush1.msra.mxu0 0.0
          %707 = vmatprep.subr.mxu0 0.0
          %708 = vmatpush1.msra.mxu0 0.0
          %709 = vmatprep.subr.mxu0 0.0
          %710 = vmatpush1.msra.mxu0 0.0
          %711 = vmatprep.subr.mxu0 0.0
          %712 = vmatpush1.msra.mxu0 0.0
          %713 = vmatprep.subr.mxu0 0.0
          %714 = vmatpush1.msra.mxu0 0.0
          %715 = vmatprep.subr.mxu0 0.0
          %716 = vmatpush1.msra.mxu0 0.0
          %717 = vmatprep.subr.mxu0 0.0
          %718 = vmatpush1.msra.mxu0 0.0
          %719 = vmatprep.subr.mxu0 0.0
          %720 = vmatpush1.msra.mxu0 0.0
          %721 = vmatprep.subr.mxu0 0.0
          %722 = vmatpush1.msra.mxu0 0.0
          %723 = vmatprep.subr.mxu0 0.0
          %724 = vmatpush1.msra.mxu0 0.0
          %725 = vmatprep.subr.mxu0 0.0
          %726 = vmatpush1.msra.mxu0 0.0
          %727 = vmatprep.subr.mxu0 0.0
          %728 = vmatpush1.msra.mxu0 0.0
          %729 = vmatprep.subr.mxu0 0.0
          %730 = vmatpush1.msra.mxu0 0.0
          %731 = vmatprep.mubr.f32.mxu0 0.0
          %732 = vmatmul.mubr.f32.gmra.mrb[0].mxu0 %v661
          %v733 = vpop.f32.mrb[0].mxu0
          %v734 = vadd.f32 %v658, %v733
          %v735 = vpop.f32.mrb[0].mxu0
          %736 = vdwg.mxu0
          %v737 = vld [vmem:[%s5] sm:$0xf]
          %vm738 = vcmask 15360
          %v740 = vsel %vm738, %v737, 0
          %vm742 = vcmask 1041408
          %v744 = vsel %vm742, %v734, 0
          %746 = vmatprep.subr.mxu0 0.0
          %747 = vmatpush1.msra.mxu0 %v744
          %748 = vmatprep.subr.mxu0 0.0
          %749 = vmatpush1.msra.mxu0 0.0
          %750 = vmatprep.subr.mxu0 0.0
          %751 = vmatpush1.msra.mxu0 0.0
          %752 = vmatprep.subr.mxu0 0.0
          %753 = vmatpush1.msra.mxu0 0.0
          %754 = vmatprep.subr.mxu0 0.0
          %755 = vmatpush1.msra.mxu0 0.0
          %756 = vmatprep.subr.mxu0 0.0
          %757 = vmatpush1.msra.mxu0 0.0
          %758 = vmatprep.subr.mxu0 0.0
          %759 = vmatpush1.msra.mxu0 0.0
          %760 = vmatprep.subr.mxu0 0.0
          %761 = vmatpush1.msra.mxu0 0.0
          %762 = vmatprep.subr.mxu0 0.0
          %763 = vmatpush1.msra.mxu0 0.0
          %764 = vmatprep.subr.mxu0 0.0
          %765 = vmatpush1.msra.mxu0 0.0
          %766 = vmatprep.subr.mxu0 0.0
          %767 = vmatpush1.msra.mxu0 0.0
          %768 = vmatprep.subr.mxu0 0.0
          %769 = vmatpush1.msra.mxu0 0.0
          %770 = vmatprep.subr.mxu0 0.0
          %771 = vmatpush1.msra.mxu0 0.0
          %772 = vmatprep.subr.mxu0 0.0
          %773 = vmatpush1.msra.mxu0 0.0
          %774 = vmatprep.subr.mxu0 0.0
          %775 = vmatpush1.msra.mxu0 0.0
          %776 = vmatprep.subr.mxu0 0.0
          %777 = vmatpush1.msra.mxu0 0.0
          %778 = vmatprep.subr.mxu0 0.0
          %779 = vmatpush1.msra.mxu0 0.0
          %780 = vmatprep.subr.mxu0 0.0
          %781 = vmatpush1.msra.mxu0 0.0
          %782 = vmatprep.subr.mxu0 0.0
          %783 = vmatpush1.msra.mxu0 0.0
          %784 = vmatprep.subr.mxu0 0.0
          %785 = vmatpush1.msra.mxu0 0.0
          %786 = vmatprep.subr.mxu0 0.0
          %787 = vmatpush1.msra.mxu0 0.0
          %788 = vmatprep.subr.mxu0 0.0
          %789 = vmatpush1.msra.mxu0 0.0
          %790 = vmatprep.subr.mxu0 0.0
          %791 = vmatpush1.msra.mxu0 0.0
          %792 = vmatprep.subr.mxu0 0.0
          %793 = vmatpush1.msra.mxu0 0.0
          %794 = vmatprep.subr.mxu0 0.0
          %795 = vmatpush1.msra.mxu0 0.0
          %796 = vmatprep.subr.mxu0 0.0
          %797 = vmatpush1.msra.mxu0 0.0
          %798 = vmatprep.subr.mxu0 0.0
          %799 = vmatpush1.msra.mxu0 0.0
          %800 = vmatprep.subr.mxu0 0.0
          %801 = vmatpush1.msra.mxu0 0.0
          %802 = vmatprep.subr.mxu0 0.0
          %803 = vmatpush1.msra.mxu0 0.0
          %804 = vmatprep.subr.mxu0 0.0
          %805 = vmatpush1.msra.mxu0 0.0
          %806 = vmatprep.subr.mxu0 0.0
          %807 = vmatpush1.msra.mxu0 0.0
          %808 = vmatprep.subr.mxu0 0.0
          %809 = vmatpush1.msra.mxu0 0.0
          %810 = vmatprep.mubr.f32.mxu0 0.0
          %811 = vmatmul.mubr.f32.gmra.mrb[0].mxu0 %v740
          %v812 = vpop.f32.mrb[0].mxu0
          %v813 = vadd.f32 0.0, %v812
          %v814 = vpop.f32.mrb[0].mxu0
          %815 = vdwg.mxu0
          %vm816 = vcmask 3072
          %v817 = vsel %vm816, %v813, 0.0
          %v818 = vrot.slane %v817, 4
          %v819 = vadd.f32 %v817, %v818
          %v820 = vrot.slane %v819, 2
          %v821 = vadd.f32 %v819, %v820
          %v822 = vrot.slane %v821, 1
          %v823 = vadd.f32 %v821, %v822
          %v824 = vrcp.pop 4.0
          %v825 = vmul.f32 %v823, %v824
          %v826 = vsub.f32 %v813, %v825
          %v827 = vmul.f32 %v826, %v826
          %v828 = vsel %vm816, %v827, 0.0
          %v829 = vrot.slane %v828, 4
          %v830 = vadd.f32 %v828, %v829
          %v831 = vrot.slane %v830, 2
          %v832 = vadd.f32 %v830, %v831
          %v833 = vrot.slane %v832, 1
          %v834 = vadd.f32 %v832, %v833
          %v835 = vmul.f32 %v834, %v824
          %v836 = vadd.f32 %v835, 1e-05
          %v837 = vrsqrt.pop %v836
          %v838 = vmul.f32 %v826, %v837
          %v839 = vld [vmem:[%s6] sm:$0xf]
          %v840 = vmul.f32 %v838, %v839
          %v841 = vld [vmem:[%s7] sm:$0xf]
          %v842 = vadd.f32 %v840, %v841
          %v843 = vxor.u32 %v842, 2147483648
          %v844 = vmul.f32 %v843, 1.442695
          %v845 = vpow.pop %v844
          %v846 = vadd.f32 %v845, 1.0
          %v847 = vrcp.pop %v846
          %v848 = vmul.f32 1.0, %v847
          %849 = vst.msk [vmem:[#allocation6] sm:$0xf] %vm816, %v848
          %v850 = vld [vmem:[#allocation5] sm:$0xf]
          %v851 = vmul.f32 %v850, 0.00390625
          %v852 = vld [vmem:[%s8] sm:$0x3]
          %v853 = vld [vmem:[%s9] sm:$0x3]
          %v855 = vsel %vm659, %v852, 0
          %v858 = vsel %vm663, %v851, 0
          %860 = vmatprep.subr.mxu0 0.0
          %861 = vmatpush1.msra.mxu0 %v858
          %862 = vmatprep.subr.mxu0 0.0
          %863 = vmatpush1.msra.mxu0 0.0
          %864 = vmatprep.subr.mxu0 0.0
          %865 = vmatpush1.msra.mxu0 0.0
          %866 = vmatprep.subr.mxu0 0.0
          %867 = vmatpush1.msra.mxu0 0.0
          %868 = vmatprep.subr.mxu0 0.0
          %869 = vmatpush1.msra.mxu0 0.0
          %870 = vmatprep.subr.mxu0 0.0
          %871 = vmatpush1.msra.mxu0 0.0
          %872 = vmatprep.subr.mxu0 0.0
          %873 = vmatpush1.msra.mxu0 0.0
          %874 = vmatprep.subr.mxu0 0.0
          %875 = vmatpush1.msra.mxu0 0.0
          %876 = vmatprep.subr.mxu0 0.0
          %877 = vmatpush1.msra.mxu0 0.0
          %878 = vmatprep.subr.mxu0 0.0
          %879 = vmatpush1.msra.mxu0 0.0
          %880 = vmatprep.subr.mxu0 0.0
          %881 = vmatpush1.msra.mxu0 0.0
          %882 = vmatprep.subr.mxu0 0.0
          %883 = vmatpush1.msra.mxu0 0.0
          %884 = vmatprep.subr.mxu0 0.0
          %885 = vmatpush1.msra.mxu0 0.0
          %886 = vmatprep.subr.mxu0 0.0
          %887 = vmatpush1.msra.mxu0 0.0
          %888 = vmatprep.subr.mxu0 0.0
          %889 = vmatpush1.msra.mxu0 0.0
          %890 = vmatprep.subr.mxu0 0.0
          %891 = vmatpush1.msra.mxu0 0.0
          %892 = vmatprep.subr.mxu0 0.0
          %893 = vmatpush1.msra.mxu0 0.0
          %894 = vmatprep.subr.mxu0 0.0
          %895 = vmatpush1.msra.mxu0 0.0
          %896 = vmatprep.subr.mxu0 0.0
          %897 = vmatpush1.msra.mxu0 0.0
          %898 = vmatprep.subr.mxu0 0.0
          %899 = vmatpush1.msra.mxu0 0.0
          %900 = vmatprep.subr.mxu0 0.0
          %901 = vmatpush1.msra.mxu0 0.0
          %902 = vmatprep.subr.mxu0 0.0
          %903 = vmatpush1.msra.mxu0 0.0
          %904 = vmatprep.subr.mxu0 0.0
          %905 = vmatpush1.msra.mxu0 0.0
          %906 = vmatprep.subr.mxu0 0.0
          %907 = vmatpush1.msra.mxu0 0.0
          %908 = vmatprep.subr.mxu0 0.0
          %909 = vmatpush1.msra.mxu0 0.0
          %910 = vmatprep.subr.mxu0 0.0
          %911 = vmatpush1.msra.mxu0 0.0
          %912 = vmatprep.subr.mxu0 0.0
          %913 = vmatpush1.msra.mxu0 0.0
          %914 = vmatprep.subr.mxu0 0.0
          %915 = vmatpush1.msra.mxu0 0.0
          %916 = vmatprep.subr.mxu0 0.0
          %917 = vmatpush1.msra.mxu0 0.0
          %918 = vmatprep.subr.mxu0 0.0
          %919 = vmatpush1.msra.mxu0 0.0
          %920 = vmatprep.subr.mxu0 0.0
          %921 = vmatpush1.msra.mxu0 0.0
          %922 = vmatprep.subr.mxu0 0.0
          %923 = vmatpush1.msra.mxu0 0.0
          %924 = vmatprep.mubr.f32.mxu0 0.0
          %925 = vmatmul.mubr.f32.gmra.mrb[0].mxu0 %v855
          %v926 = vpop.f32.mrb[0].mxu0
          %v927 = vadd.f32 %v853, %v926
          %v928 = vpop.f32.mrb[0].mxu0
          %929 = vdwg.mxu0
          %vm930 = vcmask 1024
          %v931 = vsel %vm930, %v927, -inf
          %v932 = vrot.slane %v931, 4
          %v933 = vmax.f32 %v931, %v932
          %v934 = vrot.slane %v933, 2
          %v935 = vmax.f32 %v933, %v934
          %v936 = vrot.slane %v935, 1
          %v937 = vmax.f32 %v935, %v936
          %v938 = vsub.f32 %v927, %v937
          %v939 = vmul.f32 %v938, 1.442695
          %v940 = vpow.pop %v939
          %v941 = vsel %vm930, %v940, 0.0
          %v942 = vrot.slane %v941, 4
          %v943 = vadd.f32 %v941, %v942
          %v944 = vrot.slane %v943, 2
          %v945 = vadd.f32 %v943, %v944
          %v946 = vrot.slane %v945, 1
          %v947 = vadd.f32 %v945, %v946
          %v948 = vrcp.pop %v947
          %v949 = vmul.f32 %v940, %v948
          %v950 = vld [vmem:[%s10] sm:$0x3]
          %951 = vxpose.xlu0.b32.start [1/16] %v949, 128
          %952 = vxpose.xlu0.b32.cont [2/16] 0.0, 128
          %953 = vxpose.xlu0.b32.cont [3/16] 0.0, 128
          %954 = vxpose.xlu0.b32.cont [4/16] 0.0, 128
          %955 = vxpose.xlu0.b32.cont [5/16] 0.0, 128
          %956 = vxpose.xlu0.b32.cont [6/16] 0.0, 128
          %957 = vxpose.xlu0.b32.cont [7/16] 0.0, 128
          %958 = vxpose.xlu0.b32.cont [8/16] 0.0, 128
          %959 = vxpose.xlu0.b32.cont [9/16] 0.0, 128
          %960 = vxpose.xlu0.b32.cont [10/16] 0.0, 128
          %961 = vxpose.xlu0.b32.cont [11/16] 0.0, 128
          %962 = vxpose.xlu0.b32.cont [12/16] 0.0, 128
          %963 = vxpose.xlu0.b32.cont [13/16] 0.0, 128
          %964 = vxpose.xlu0.b32.cont [14/16] 0.0, 128
          %965 = vxpose.xlu0.b32.cont [15/16] 0.0, 128
          %966 = vxpose.xlu0.b32.end [16/16] 0.0, 128
          %v967 = vpop.trf.xlu0
          %v968 = vpop.trf.xlu0
          %v969 = vpop.trf.xlu0
          %v970 = vpop.trf.xlu0
          %v971 = vpop.trf.xlu0
          %v972 = vpop.trf.xlu0
          %v973 = vpop.trf.xlu0
          %v974 = vpop.trf.xlu0
          %v975 = vpop.trf.xlu0
          %v976 = vpop.trf.xlu0
          %v977 = vpop.trf.xlu0
          %v978 = vpop.trf.xlu0
          %v979 = vpop.trf.xlu0
          %v980 = vpop.trf.xlu0
          %v981 = vpop.trf.xlu0
          %v982 = vpop.trf.xlu0
          %v984 = vsel %vm738, %v967, 0
          %v987 = vsel %vm742, %v950, 0
          %989 = vmatprep.subr.mxu0 0.0
          %990 = vmatpush1.msra.mxu0 %v987
          %991 = vmatprep.subr.mxu0 0.0
          %992 = vmatpush1.msra.mxu0 0.0
          %993 = vmatprep.subr.mxu0 0.0
          %994 = vmatpush1.msra.mxu0 0.0
          %995 = vmatprep.subr.mxu0 0.0
          %996 = vmatpush1.msra.mxu0 0.0
          %997 = vmatprep.subr.mxu0 0.0
          %998 = vmatpush1.msra.mxu0 0.0
          %999 = vmatprep.subr.mxu0 0.0
          %1000 = vmatpush1.msra.mxu0 0.0
          %1001 = vmatprep.subr.mxu0 0.0
          %1002 = vmatpush1.msra.mxu0 0.0
          %1003 = vmatprep.subr.mxu0 0.0
          %1004 = vmatpush1.msra.mxu0 0.0
          %1005 = vmatprep.subr.mxu0 0.0
          %1006 = vmatpush1.msra.mxu0 0.0
          %1007 = vmatprep.subr.mxu0 0.0
          %1008 = vmatpush1.msra.mxu0 0.0
          %1009 = vmatprep.subr.mxu0 0.0
          %1010 = vmatpush1.msra.mxu0 0.0
          %1011 = vmatprep.subr.mxu0 0.0
          %1012 = vmatpush1.msra.mxu0 0.0
          %1013 = vmatprep.subr.mxu0 0.0
          %1014 = vmatpush1.msra.mxu0 0.0
          %1015 = vmatprep.subr.mxu0 0.0
          %1016 = vmatpush1.msra.mxu0 0.0
          %1017 = vmatprep.subr.mxu0 0.0
          %1018 = vmatpush1.msra.mxu0 0.0
          %1019 = vmatprep.subr.mxu0 0.0
          %1020 = vmatpush1.msra.mxu0 0.0
          %1021 = vmatprep.subr.mxu0 0.0
          %1022 = vmatpush1.msra.mxu0 0.0
          %1023 = vmatprep.subr.mxu0 0.0
          %1024 = vmatpush1.msra.mxu0 0.0
          %1025 = vmatprep.subr.mxu0 0.0
          %1026 = vmatpush1.msra.mxu0 0.0
          %1027 = vmatprep.subr.mxu0 0.0
          %1028 = vmatpush1.msra.mxu0 0.0
          %1029 = vmatprep.subr.mxu0 0.0
          %1030 = vmatpush1.msra.mxu0 0.0
          %1031 = vmatprep.subr.mxu0 0.0
          %1032 = vmatpush1.msra.mxu0 0.0
          %1033 = vmatprep.subr.mxu0 0.0
          %1034 = vmatpush1.msra.mxu0 0.0
          %1035 = vmatprep.subr.mxu0 0.0
          %1036 = vmatpush1.msra.mxu0 0.0
          %1037 = vmatprep.subr.mxu0 0.0
          %1038 = vmatpush1.msra.mxu0 0.0
          %1039 = vmatprep.subr.mxu0 0.0
          %1040 = vmatpush1.msra.mxu0 0.0
          %1041 = vmatprep.subr.mxu0 0.0
          %1042 = vmatpush1.msra.mxu0 0.0
          %1043 = vmatprep.subr.mxu0 0.0
          %1044 = vmatpush1.msra.mxu0 0.0
          %1045 = vmatprep.subr.mxu0 0.0
          %1046 = vmatpush1.msra.mxu0 0.0
          %1047 = vmatprep.subr.mxu0 0.0
          %1048 = vmatpush1.msra.mxu0 0.0
          %1049 = vmatprep.subr.mxu0 0.0
          %1050 = vmatpush1.msra.mxu0 0.0
          %1051 = vmatprep.subr.mxu0 0.0
          %1052 = vmatpush1.msra.mxu0 0.0
          %1053 = vmatprep.mubr.f32.mxu0 0.0
          %1054 = vmatmul.mubr.f32.gmra.mrb[0].mxu0 %v984
          %v1055 = vpop.f32.mrb[0].mxu0
          %v1056 = vadd.f32 0.0, %v1055
          %v1057 = vpop.f32.mrb[0].mxu0
          %1058 = vdwg.mxu0
          %vm1059 = vcmask 24576
          %1060 = vst.msk [vmem:[#allocation7] sm:$0x1] %vm1059, %v1056
          %v1061 = vld [vmem:[%s11] sm:$0x3]
          %v1062 = vmul.f32 %v949, %v1061
          %v1063 = vsel %vm930, %v1062, 0.0
          %v1064 = vrot.slane %v1063, 4
          %v1065 = vadd.f32 %v1063, %v1064
          %v1066 = vrot.slane %v1065, 2
          %v1067 = vadd.f32 %v1065, %v1066
          %v1068 = vrot.slane %v1067, 1
          %v1069 = vadd.f32 %v1067, %v1068
          %vm1070 = vcmask 0
          %1071 = vst.msk [vmem:[#allocation8] sm:$0x1] %vm1070, %v1069
        $region80: #{tpu_custom_call.1} parent=67 // pred_fallthru
          _
        // Predicated region
        $region81: #{tpu_custom_call.1} parent=67 // pred_check
          %p1072 = pneg %p642
        $region82: #{tpu_custom_call.1} parent=67 // pred_check_branch
          %1074 = sbr.rel (%p1072) target = $region84
        $region83: #{tpu_custom_call.1} parent=67 // pred_region
          %v1075 = vld [vmem:[%s451] sm:$0xff]
          %v1076 = vld [vmem:[#allocation7] sm:$0x1]
          %v1077 = vld [vmem:[#allocation8] sm:$0x1]
          %1079 = vset.pattern.permute.xlu0 0
          %1080 = vperm.xlu0 %1079, %v1077
          %v1081 = vpop.permute.xlu0 %1080
          %v1083 = vlaneseq
          %v1084 = vshrl.u32 %v1083, 7
          %v1085 = vsub.s32 0, %v1084
          %v1086 = vrot.slane %v1081, %v1085
          %v1088 = vcombine.high %v1075, %v1075
          %vm1089 = vcmask 31744
          %v1091 = vsel %vm1089, %v1076, 0
          %vm1093 = vcmask 1043456
          %v1094 = vsel %vm1093, %v1075, 0
          %v1096 = vsel %vm1093, %v1088, 0
          %1098 = vmatprep.subr.mxu0 %v1096
          %1099 = vmatpush1.msra.mxu0 %v1094
          %1100 = vmatprep.subr.mxu0 0.0
          %1101 = vmatpush1.msra.mxu0 0.0
          %1102 = vmatprep.subr.mxu0 0.0
          %1103 = vmatpush1.msra.mxu0 0.0
          %1104 = vmatprep.subr.mxu0 0.0
          %1105 = vmatpush1.msra.mxu0 0.0
          %1106 = vmatprep.subr.mxu0 0.0
          %1107 = vmatpush1.msra.mxu0 0.0
          %1108 = vmatprep.subr.mxu0 0.0
          %1109 = vmatpush1.msra.mxu0 0.0
          %1110 = vmatprep.subr.mxu0 0.0
          %1111 = vmatpush1.msra.mxu0 0.0
          %1112 = vmatprep.subr.mxu0 0.0
          %1113 = vmatpush1.msra.mxu0 0.0
          %1114 = vmatprep.subr.mxu0 0.0
          %1115 = vmatpush1.msra.mxu0 0.0
          %1116 = vmatprep.subr.mxu0 0.0
          %1117 = vmatpush1.msra.mxu0 0.0
          %1118 = vmatprep.subr.mxu0 0.0
          %1119 = vmatpush1.msra.mxu0 0.0
          %1120 = vmatprep.subr.mxu0 0.0
          %1121 = vmatpush1.msra.mxu0 0.0
          %1122 = vmatprep.subr.mxu0 0.0
          %1123 = vmatpush1.msra.mxu0 0.0
          %1124 = vmatprep.subr.mxu0 0.0
          %1125 = vmatpush1.msra.mxu0 0.0
          %1126 = vmatprep.subr.mxu0 0.0
          %1127 = vmatpush1.msra.mxu0 0.0
          %1128 = vmatprep.subr.mxu0 0.0
          %1129 = vmatpush1.msra.mxu0 0.0
          %1130 = vmatprep.subr.mxu0 0.0
          %1131 = vmatpush1.msra.mxu0 0.0
          %1132 = vmatprep.subr.mxu0 0.0
          %1133 = vmatpush1.msra.mxu0 0.0
          %1134 = vmatprep.subr.mxu0 0.0
          %1135 = vmatpush1.msra.mxu0 0.0
          %1136 = vmatprep.subr.mxu0 0.0
          %1137 = vmatpush1.msra.mxu0 0.0
          %1138 = vmatprep.subr.mxu0 0.0
          %1139 = vmatpush1.msra.mxu0 0.0
          %1140 = vmatprep.subr.mxu0 0.0
          %1141 = vmatpush1.msra.mxu0 0.0
          %1142 = vmatprep.subr.mxu0 0.0
          %1143 = vmatpush1.msra.mxu0 0.0
          %1144 = vmatprep.subr.mxu0 0.0
          %1145 = vmatpush1.msra.mxu0 0.0
          %1146 = vmatprep.subr.mxu0 0.0
          %1147 = vmatpush1.msra.mxu0 0.0
          %1148 = vmatprep.subr.mxu0 0.0
          %1149 = vmatpush1.msra.mxu0 0.0
          %1150 = vmatprep.subr.mxu0 0.0
          %1151 = vmatpush1.msra.mxu0 0.0
          %1152 = vmatprep.subr.mxu0 0.0
          %1153 = vmatpush1.msra.mxu0 0.0
          %1154 = vmatprep.subr.mxu0 0.0
          %1155 = vmatpush1.msra.mxu0 0.0
          %1156 = vmatprep.subr.mxu0 0.0
          %1157 = vmatpush1.msra.mxu0 0.0
          %1158 = vmatprep.subr.mxu0 0.0
          %1159 = vmatpush1.msra.mxu0 0.0
          %1160 = vmatprep.subr.mxu0 0.0
          %1161 = vmatpush1.msra.mxu0 0.0
          %1162 = vmatprep.mubr.f32.mxu0 0.0
          %1163 = vmatmul.mubr.f32.gmra.mrb[0].mxu0 %v1091
          %v1164 = vpop.f32.mrb[0].mxu0
          %v1165 = vadd.f32 %v1086, %v1164
          %v1166 = vpop.f32.mrb[0].mxu0
          %v1167 = vadd.f32 %v1086, %v1166
          %1168 = vdwg.mxu0
          %v1169 = vxor.u32 %v1165, 2147483648
          %v1170 = vxor.u32 %v1167, 2147483648
          %v1171 = vmul.f32 %v1169, 1.442695
          %v1172 = vpow.pop %v1171
          %v1173 = vmul.f32 %v1170, 1.442695
          %v1174 = vpow.pop %v1173
          %v1175 = vadd.f32 %v1172, 1.0
          %v1176 = vadd.f32 %v1174, 1.0
          %v1177 = vrcp.pop %v1175
          %v1178 = vmul.f32 1.0, %v1177
          %v1179 = vrcp.pop %v1176
          %v1180 = vmul.f32 1.0, %v1179
          %v1181 = vld [vmem:[#allocation6] sm:$0xf]
          %1183 = vset.pattern.permute.xlu0 0
          %1184 = vperm.xlu0 %1183, %v1181
          %v1185 = vpop.permute.xlu0 %1184
          %v1187 = vlaneseq
          %v1188 = vshrl.u32 %v1187, 7
          %v1189 = vsub.s32 0, %v1188
          %v1190 = vrot.slane %v1178, %v1189
          %v1191 = vlaneseq
          %v1192 = vshrl.u32 %v1191, 7
          %v1193 = vsub.s32 0, %v1192
          %v1194 = vrot.slane %v1180, %v1193
          %v1195 = vadd.f32 %v1185, %v1190
          %v1196 = vadd.f32 %v1185, %v1194
          %v1199 = vcombine.low %v1195, %v1196
          %v1201 = vmul.f32 %v1075, %v1199
          %1202 = vst [vmem:[%s442] sm:$0xff] %v1201
        $region84: #{tpu_custom_call.1} parent=67 // pred_fallthru
          _
        %s1203 = sand.u32 %s318, 1
        %s1204 = scalar_lea.sflag [#allocation11], %s1203
        %s1205 = sand.u32 %s318, 1
        %s1206 = smul.addr %s1205, 8
        %s1207 = scalar_lea.vmem [#allocation10], %s1206
        // Predicated region
        $region85: #{tpu_custom_call.1} parent=67 // pred_check
          %p1208 = pneg %p328
        $region86: #{tpu_custom_call.1} parent=67 // pred_check_branch
          %1210 = sbr.rel (%p1208) target = $region88
        $region87: #{tpu_custom_call.1} parent=67 // pred_region
          %s1211 = smul.u32 %s34, %s35
          %s1212 = smul.u32 2, %s1211
          %s1214 = ssub.s32 128, 128
          %1215 = vsyncadd %s1204, %s1214
          %s1216 = smul.addr %s33, 2
          %s1217 = sadd.s32 %s1212, %s1216
          %s1218 = smul.addr %s1217, 64
          %s1219 = scalar_lea.hbm %s12, %s1218
          %s1221 = sshll.u32 %s1207, 4
          %s1222 = int_to_ptr.vmem [resolvable:$true] %s1221
          %1224 = dma.vmem_to_hbm [thread:$0]  %s1222, 128, %s1219, %s1204
        $region88: #{tpu_custom_call.1} parent=67 // pred_fallthru
          _
      $region68: #{tpu_custom_call.1} parent=5 // pred_fallthru
        _
      %p1225 = scmp.le.s32.totalorder 2, %s23
      // Predicated region
      $region89: #{tpu_custom_call.1} parent=5 // pred_check
        %p1226 = pneg %p1225
      $region90: #{tpu_custom_call.1} parent=5 // pred_check_branch
        %1228 = sbr.rel (%p1226) target = $region92
      $region91: #{tpu_custom_call.1} parent=5 // pred_region
        %s1229 = ssub.s32 %s23, 2
        // Predicated region
        $region93: #{tpu_custom_call.1} parent=91 // pred_check
          %p1230 = pneg %p334
        $region94: #{tpu_custom_call.1} parent=91 // pred_check_branch
          %1232 = sbr.rel (%p1230) target = $region96
        $region95: #{tpu_custom_call.1} parent=91 // pred_region
          %s1233 = sand.u32 %s319, 1
          %s1234 = scalar_lea.sflag [#allocation11], %s1233
          %s1235 = sand.u32 %s319, 1
          %s1236 = smul.addr %s1235, 8
          %s1237 = scalar_lea.vmem [#allocation10], %s1236
          %1238 = dma.done %s1234, 128
        $region96: #{tpu_custom_call.1} parent=91 // pred_fallthru
          _
      $region92: #{tpu_custom_call.1} parent=5 // pred_fallthru
        _
    $region6: #{tpu_custom_call.1} parent=1 // loop_footer
      %s27 = sadd.s32 1, %s23
    $region7: #{tpu_custom_call.1} parent=1 // loop_footer_branch
      %22 = sbr.rel target = $region3
    $region8: #{tpu_custom_call.1} parent=1 // loop_exit
      _
    %1239 = vsyncpa [#allocation11], 1
    %s1240 = scalar_lea.sflag [#allocation11], 1
    %1241 = vsyncpa %s1240, 1

</llo_original>
